<compile_context>
chip_gen: v5e
topology: v5e:2x2
jax: 0.10.0
libtpu: 0.0.40
codegen_flags: <defaults>
</compile_context>

<pallas_src>
import functools

import jax
import jax.numpy as jnp
from jax import lax
from jax.experimental import pallas as pl
from jax.experimental.pallas import tpu as pltpu

_EPS = 1e-5
_SLOT = 8          # sublane-aligned slot per 3x3 tap in the im2col scratch


def _conv1_stats_kernel(x_ref, w1_ref, y1_ref, s_ref, ss_ref):
    """Per-sample 1x1 conv (= matmul) + partial BN1 statistics."""
    @pl.when(pl.program_id(0) == 0)
    def _():
        s_ref[...] = jnp.zeros_like(s_ref)
        ss_ref[...] = jnp.zeros_like(ss_ref)

    y = jnp.dot(w1_ref[...], x_ref[...], preferred_element_type=jnp.float32)
    y1_ref[...] = y
    s_ref[...] += jnp.sum(y, axis=1, keepdims=True)
    ss_ref[...] += jnp.sum(y * y, axis=1, keepdims=True)


def _conv2_stats_kernel(W, PAD, y1_ref, sc_ref, sh_ref, w2_ref,
                        y2_ref, s_ref, ss_ref, ypad_ref, col_ref):
    """Per-sample BN1-apply + LeakyReLU + 3x3 conv (fused im2col matmul)
    + partial BN2 statistics."""
    C2, HW = y1_ref.shape

    @pl.when(pl.program_id(0) == 0)
    def _():
        s_ref[...] = jnp.zeros_like(s_ref)
        ss_ref[...] = jnp.zeros_like(ss_ref)

    # BN1 with folded scale/shift, then LeakyReLU(0.1).
    y = y1_ref[...] * sc_ref[...] + sh_ref[...]
    y = jnp.where(y > 0, y, 0.1 * y)

    # Zero-halo scratch along the flattened (h, w) lane axis: vertically
    # out-of-image taps land in the zero pad automatically.
    ypad_ref[...] = jnp.zeros_like(ypad_ref)
    ypad_ref[:, PAD:PAD + HW] = y

    # Column-validity masks generated in-kernel (only dw = +/-1 taps can wrap
    # across a row edge).
    wi = lax.broadcasted_iota(jnp.int32, (1, HW), 1) % W
    m_left = wi >= 1            # reading column w-1 is valid
    m_right = wi < (W - 1)      # reading column w+1 is valid

    # im2col: 9 statically-offset views of the halo scratch, one 8-sublane
    # slot per tap (aligned stores; unused rows stay zero and match the
    # zero-padded weight matrix).
    col_ref[...] = jnp.zeros_like(col_ref)
    for kh in range(3):
        for kw in range(3):
            k = kh * 3 + kw
            s = (kh - 1) * W + (kw - 1)
            piece = ypad_ref[:, PAD + s:PAD + s + HW]
            if kw == 0:
                piece = jnp.where(m_left, piece, 0.0)
            elif kw == 2:
                piece = jnp.where(m_right, piece, 0.0)
            col_ref[k * _SLOT:k * _SLOT + C2, :] = piece

    # Single matmul over all 9 taps (K = 9 * _SLOT) instead of 9 tiny-K dots.
    z = jnp.dot(w2_ref[...], col_ref[...], preferred_element_type=jnp.float32)
    y2_ref[...] = z
    s_ref[...] += jnp.sum(z, axis=1, keepdims=True)
    ss_ref[...] += jnp.sum(z * z, axis=1, keepdims=True)


def _apply_bn2_residual_kernel(x_ref, y2_ref, sc_ref, sh_ref, o_ref):
    """BN2-apply + LeakyReLU + residual add."""
    z = y2_ref[...] * sc_ref[...] + sh_ref[...]
    z = jnp.where(z > 0, z, 0.1 * z)
    o_ref[...] = x_ref[...] + z


def residual_block(x_nchw, params):
    N, C, H, W = x_nchw.shape
    C2 = C // 2
    HW = H * W
    P = N * HW
    PAD = ((W + 1 + 127) // 128) * 128        # lane-aligned halo width

    x3 = x_nchw.reshape(N, C, HW).astype(jnp.float32)    # pure reshape

    # conv1 weight as (C2, C). conv biases are dropped (cancelled by BN mean).
    w1 = params["conv1_w"].reshape(C2, C).astype(jnp.float32)

    # conv2 weight as (C, 9*_SLOT): tap (kh, kw) occupies columns
    # [k*_SLOT, k*_SLOT + C2); the rest is zero (matches zero im2col rows).
    w2 = jnp.transpose(params["conv2_w"].astype(jnp.float32), (0, 2, 3, 1))
    w2m = jnp.zeros((C, 9, _SLOT), jnp.float32).at[:, :, :C2].set(
        w2.reshape(C, 9, C2)).reshape(C, 9 * _SLOT)

    acc_params = pltpu.CompilerParams(
        dimension_semantics=("arbitrary",),   # stats accumulate across the grid
        vmem_limit_bytes=32 * 1024 * 1024)
    par_params = pltpu.CompilerParams(
        dimension_semantics=("parallel",),    # pure per-sample apply pass
        vmem_limit_bytes=32 * 1024 * 1024)

    # --- Pass 1: conv1 + partial BN1 stats -------------------------------
    y1, s1, ss1 = pl.pallas_call(
        _conv1_stats_kernel,
        grid=(N,),
        in_specs=[
            pl.BlockSpec((None, C, HW), lambda n: (n, 0, 0)),
            pl.BlockSpec((C2, C), lambda n: (0, 0)),
        ],
        out_specs=[
            pl.BlockSpec((None, C2, HW), lambda n: (n, 0, 0)),
            pl.BlockSpec((C2, 1), lambda n: (0, 0)),
            pl.BlockSpec((C2, 1), lambda n: (0, 0)),
        ],
        out_shape=[
            jax.ShapeDtypeStruct((N, C2, HW), jnp.float32),
            jax.ShapeDtypeStruct((C2, 1), jnp.float32),
            jax.ShapeDtypeStruct((C2, 1), jnp.float32),
        ],
        compiler_params=acc_params,
    )(x3, w1)

    # Finalize BN1: fold affine into one per-channel scale/shift (tiny glue).
    mean1 = s1 / P
    var1 = ss1 / P - mean1 * mean1
    scale1 = params["bn1_g"].reshape(C2, 1) * lax.rsqrt(var1 + _EPS)
    shift1 = params["bn1_b"].reshape(C2, 1) - mean1 * scale1

    # --- Pass 2: BN1-apply + LeakyReLU + 3x3 conv + partial BN2 stats -----
    y2, s2, ss2 = pl.pallas_call(
        functools.partial(_conv2_stats_kernel, W, PAD),
        grid=(N,),
        in_specs=[
            pl.BlockSpec((None, C2, HW), lambda n: (n, 0, 0)),
            pl.BlockSpec((C2, 1), lambda n: (0, 0)),
            pl.BlockSpec((C2, 1), lambda n: (0, 0)),
            pl.BlockSpec((C, 9 * _SLOT), lambda n: (0, 0)),
        ],
        out_specs=[
            pl.BlockSpec((None, C, HW), lambda n: (n, 0, 0)),
            pl.BlockSpec((C, 1), lambda n: (0, 0)),
            pl.BlockSpec((C, 1), lambda n: (0, 0)),
        ],
        out_shape=[
            jax.ShapeDtypeStruct((N, C, HW), jnp.float32),
            jax.ShapeDtypeStruct((C, 1), jnp.float32),
            jax.ShapeDtypeStruct((C, 1), jnp.float32),
        ],
        scratch_shapes=[
            pltpu.VMEM((C2, HW + 2 * PAD), jnp.float32),   # zero-halo activations
            pltpu.VMEM((9 * _SLOT, HW), jnp.float32),      # im2col block
        ],
        compiler_params=acc_params,
    )(y1, scale1, shift1, w2m)

    # Finalize BN2.
    mean2 = s2 / P
    var2 = ss2 / P - mean2 * mean2
    scale2 = params["bn2_g"].reshape(C, 1) * lax.rsqrt(var2 + _EPS)
    shift2 = params["bn2_b"].reshape(C, 1) - mean2 * scale2

    # --- Pass 3: BN2-apply + LeakyReLU + residual add ----------------------
    out = pl.pallas_call(
        _apply_bn2_residual_kernel,
        grid=(N,),
        in_specs=[
            pl.BlockSpec((None, C, HW), lambda n: (n, 0, 0)),
            pl.BlockSpec((None, C, HW), lambda n: (n, 0, 0)),
            pl.BlockSpec((C, 1), lambda n: (0, 0)),
            pl.BlockSpec((C, 1), lambda n: (0, 0)),
        ],
        out_specs=pl.BlockSpec((None, C, HW), lambda n: (n, 0, 0)),
        out_shape=jax.ShapeDtypeStruct((N, C, HW), jnp.float32),
        compiler_params=par_params,
    )(x3, y2, scale2, shift2)

    return out.reshape(N, C, H, W)


def reference(x, params, eps=_EPS):
    """Pure-JAX reference matching the PyTorch forward (training-mode BN)."""
    def bn(y, g, b):
        mu = jnp.mean(y, axis=(0, 2, 3), keepdims=True)
        var = jnp.mean((y - mu) ** 2, axis=(0, 2, 3), keepdims=True)
        return ((y - mu) * lax.rsqrt(var + eps) * g[None, :, None, None]
                + b[None, :, None, None])

    def leaky(y):
        return jnp.where(y > 0, y, 0.1 * y)

    dn = ("NCHW", "OIHW", "NCHW")
    y = lax.conv_general_dilated(x, params["conv1_w"], (1, 1), [(0, 0), (0, 0)],
                                 dimension_numbers=dn)
    y = y + params["conv1_b"][None, :, None, None]
    y = leaky(bn(y, params["bn1_g"], params["bn1_b"]))
    z = lax.conv_general_dilated(y, params["conv2_w"], (1, 1), [(1, 1), (1, 1)],
                                 dimension_numbers=dn)
    z = z + params["conv2_b"][None, :, None, None]
    z = leaky(bn(z, params["bn2_g"], params["bn2_b"]))
    return x + z


if __name__ == "__main__":
    N, C, H, W = 2, 4, 16, 16
    C2 = C // 2

    key = jax.random.PRNGKey(0)
    ks = jax.random.split(key, 9)
    x = jax.random.normal(ks[0], (N, C, H, W), jnp.float32)
    params = {
        "conv1_w": 0.3 * jax.random.normal(ks[1], (C2, C, 1, 1), jnp.float32),
        "conv1_b": 0.1 * jax.random.normal(ks[2], (C2,), jnp.float32),
        "bn1_g": 1.0 + 0.1 * jax.random.normal(ks[3], (C2,), jnp.float32),
        "bn1_b": 0.1 * jax.random.normal(ks[4], (C2,), jnp.float32),
        "conv2_w": 0.3 * jax.random.normal(ks[5], (C, C2, 3, 3), jnp.float32),
        "conv2_b": 0.1 * jax.random.normal(ks[6], (C,), jnp.float32),
        "bn2_g": 1.0 + 0.1 * jax.random.normal(ks[7], (C,), jnp.float32),
        "bn2_b": 0.1 * jax.random.normal(ks[8], (C,), jnp.float32),
    }

    out = jax.jit(residual_block)(x, params)
    out = jax.block_until_ready(out)

    ref = reference(x, params)
    assert out.shape == x.shape and out.dtype == x.dtype
    if not jnp.allclose(out, ref, atol=1e-3, rtol=1e-3):
        raise AssertionError(
            f"mismatch vs reference, max abs err = {jnp.max(jnp.abs(out - ref))}")
    print("KERNEL_OK")
</pallas_src>

<mosaic_0001>
module attributes {stable_mosaic.version = 11 : i64} {
  func.func @_conv1_stats_kernel(%arg0: i32, %arg1: memref<1x4x256xf32, #tpu.memory_space<vmem>>, %arg2: memref<2x4xf32, #tpu.memory_space<vmem>>, %arg3: memref<1x2x256xf32, #tpu.memory_space<vmem>>, %arg4: memref<2x1xf32, #tpu.memory_space<vmem>>, %arg5: memref<2x1xf32, #tpu.memory_space<vmem>>) attributes {dimension_semantics = [#tpu.dimension_semantics<arbitrary>], iteration_bounds = array<i64: 2>, scalar_prefetch = 0 : i64, scratch_operands = 0 : i64, tpu.core_type = #tpu.core_type<tc>, window_params = [{transform_indices = @transform_0, window_bounds = array<i64: 1, 4, 256>}, {pipeline_mode = #tpu.pipeline_mode<synchronous>, transform_indices = @transform_1, window_bounds = array<i64: 2, 4>}, {transform_indices = @transform_2, window_bounds = array<i64: 1, 2, 256>}, {pipeline_mode = #tpu.pipeline_mode<synchronous>, transform_indices = @transform_3, window_bounds = array<i64: 2, 1>}, {pipeline_mode = #tpu.pipeline_mode<synchronous>, transform_indices = @transform_4, window_bounds = array<i64: 2, 1>}]} {
    %c0_i32 = arith.constant 0 : i32
    %0 = arith.cmpi eq, %arg0, %c0_i32 : i32
    %1 = arith.extui %0 : i1 to i32
    %c0_i32_0 = arith.constant 0 : i32
    %2 = arith.cmpi ne, %1, %c0_i32_0 : i32
    scf.if %2 {
      %cst_18 = arith.constant 0.000000e+00 : f32
      %21 = vector.broadcast %cst_18 : f32 to vector<2x1xf32>
      %c0_19 = arith.constant 0 : index
      %c0_20 = arith.constant 0 : index
      %22 = vector.load %arg4[%c0_19, %c0_20] : memref<2x1xf32, #tpu.memory_space<vmem>>, vector<2x1xf32>
      tpu.vector_store %arg4[%c0_19, %c0_20], %21 {strides = array<i32>} : memref<2x1xf32, #tpu.memory_space<vmem>>, vector<2x1xf32>,
      %cst_21 = arith.constant 0.000000e+00 : f32
      %23 = vector.broadcast %cst_21 : f32 to vector<2x1xf32>
      %c0_22 = arith.constant 0 : index
      %c0_23 = arith.constant 0 : index
      %24 = vector.load %arg5[%c0_22, %c0_23] : memref<2x1xf32, #tpu.memory_space<vmem>>, vector<2x1xf32>
      tpu.vector_store %arg5[%c0_22, %c0_23], %23 {strides = array<i32>} : memref<2x1xf32, #tpu.memory_space<vmem>>, vector<2x1xf32>,
    } else {
    }
    %c0 = arith.constant 0 : index
    %c0_1 = arith.constant 0 : index
    %3 = vector.load %arg2[%c0, %c0_1] : memref<2x4xf32, #tpu.memory_space<vmem>>, vector<2x4xf32>
    %c0_2 = arith.constant 0 : index
    %c0_3 = arith.constant 0 : index
    %c0_4 = arith.constant 0 : index
    %4 = vector.load %arg1[%c0_2, %c0_3, %c0_4] : memref<1x4x256xf32, #tpu.memory_space<vmem>>, vector<1x4x256xf32>
    %5 = vector.shape_cast %4 : vector<1x4x256xf32> to vector<4x256xf32>
    %cst = arith.constant dense<0.000000e+00> : vector<2x256xf32>
    %6 = tpu.matmul %3, %5, %cst {dimension_numbers = #tpu.dot_dimension_numbers<[1], [0], [0], [1], [0, 0, 1, 1], [], []>} : vector<2x4xf32>, vector<4x256xf32>, vector<2x256xf32> -> vector<2x256xf32>
    %c0_5 = arith.constant 0 : index
    %c0_6 = arith.constant 0 : index
    %c0_7 = arith.constant 0 : index
    %7 = vector.load %arg3[%c0_5, %c0_6, %c0_7] : memref<1x2x256xf32, #tpu.memory_space<vmem>>, vector<1x2x256xf32>
    %8 = vector.shape_cast %7 : vector<1x2x256xf32> to vector<2x256xf32>
    %9 = vector.shape_cast %6 : vector<2x256xf32> to vector<1x2x256xf32>
    tpu.vector_store %arg3[%c0_5, %c0_6, %c0_7], %9 {strides = array<i32>} : memref<1x2x256xf32, #tpu.memory_space<vmem>>, vector<1x2x256xf32>,
    %c0_8 = arith.constant 0 : index
    %c0_9 = arith.constant 0 : index
    %10 = vector.load %arg4[%c0_8, %c0_9] : memref<2x1xf32, #tpu.memory_space<vmem>>, vector<2x1xf32>
    %cst_10 = arith.constant dense<0.000000e+00> : vector<2xf32>
    %11 = vector.multi_reduction <add>, %6, %cst_10 [1] : vector<2x256xf32> to vector<2xf32>
    %12 = vector.shape_cast %11 : vector<2xf32> to vector<2x1xf32>
    %13 = arith.addf %10, %12 : vector<2x1xf32>
    %c0_11 = arith.constant 0 : index
    %c0_12 = arith.constant 0 : index
    %14 = vector.load %arg4[%c0_11, %c0_12] : memref<2x1xf32, #tpu.memory_space<vmem>>, vector<2x1xf32>
    tpu.vector_store %arg4[%c0_11, %c0_12], %13 {strides = array<i32>} : memref<2x1xf32, #tpu.memory_space<vmem>>, vector<2x1xf32>,
    %c0_13 = arith.constant 0 : index
    %c0_14 = arith.constant 0 : index
    %15 = vector.load %arg5[%c0_13, %c0_14] : memref<2x1xf32, #tpu.memory_space<vmem>>, vector<2x1xf32>
    %16 = arith.mulf %6, %6 : vector<2x256xf32>
    %cst_15 = arith.constant dense<0.000000e+00> : vector<2xf32>
    %17 = vector.multi_reduction <add>, %16, %cst_15 [1] : vector<2x256xf32> to vector<2xf32>
    %18 = vector.shape_cast %17 : vector<2xf32> to vector<2x1xf32>
    %19 = arith.addf %15, %18 : vector<2x1xf32>
    %c0_16 = arith.constant 0 : index
    %c0_17 = arith.constant 0 : index
    %20 = vector.load %arg5[%c0_16, %c0_17] : memref<2x1xf32, #tpu.memory_space<vmem>>, vector<2x1xf32>
    tpu.vector_store %arg5[%c0_16, %c0_17], %19 {strides = array<i32>} : memref<2x1xf32, #tpu.memory_space<vmem>>, vector<2x1xf32>,
    return
  }
  func.func @transform_0(%arg0: i32) -> (i32, i32, i32) {
    %c0_i32 = arith.constant 0 : i32
    %c0_i32_0 = arith.constant 0 : i32
    %c0_i32_1 = arith.constant 0 : i32
    return %arg0, %c0_i32, %c0_i32_0 : i32, i32, i32
  }
  func.func @transform_1(%arg0: i32) -> (i32, i32) {
    %c0_i32 = arith.constant 0 : i32
    %c0_i32_0 = arith.constant 0 : i32
    %c0_i32_1 = arith.constant 0 : i32
    return %c0_i32, %c0_i32_0 : i32, i32
  }
  func.func @transform_2(%arg0: i32) -> (i32, i32, i32) {
    %c0_i32 = arith.constant 0 : i32
    %c0_i32_0 = arith.constant 0 : i32
    %c0_i32_1 = arith.constant 0 : i32
    return %arg0, %c0_i32, %c0_i32_0 : i32, i32, i32
  }
  func.func @transform_3(%arg0: i32) -> (i32, i32) {
    %c0_i32 = arith.constant 0 : i32
    %c0_i32_0 = arith.constant 0 : i32
    %c0_i32_1 = arith.constant 0 : i32
    return %c0_i32, %c0_i32_0 : i32, i32
  }
  func.func @transform_4(%arg0: i32) -> (i32, i32) {
    %c0_i32 = arith.constant 0 : i32
    %c0_i32_0 = arith.constant 0 : i32
    %c0_i32_1 = arith.constant 0 : i32
    return %c0_i32, %c0_i32_0 : i32, i32
  }
}

module attributes {stable_mosaic.version = 11 : i64} {
  func.func @_apply_bn2_residual_kernel(%arg0: i32, %arg1: memref<1x4x256xf32, #tpu.memory_space<vmem>>, %arg2: memref<1x4x256xf32, #tpu.memory_space<vmem>>, %arg3: memref<4x1xf32, #tpu.memory_space<vmem>>, %arg4: memref<4x1xf32, #tpu.memory_space<vmem>>, %arg5: memref<1x4x256xf32, #tpu.memory_space<vmem>>) attributes {dimension_semantics = [#tpu.dimension_semantics<parallel>], iteration_bounds = array<i64: 2>, scalar_prefetch = 0 : i64, scratch_operands = 0 : i64, tpu.core_type = #tpu.core_type<tc>, window_params = [{transform_indices = @transform_0, window_bounds = array<i64: 1, 4, 256>}, {transform_indices = @transform_1, window_bounds = array<i64: 1, 4, 256>}, {pipeline_mode = #tpu.pipeline_mode<synchronous>, transform_indices = @transform_2, window_bounds = array<i64: 4, 1>}, {pipeline_mode = #tpu.pipeline_mode<synchronous>, transform_indices = @transform_3, window_bounds = array<i64: 4, 1>}, {transform_indices = @transform_4, window_bounds = array<i64: 1, 4, 256>}]} {
    %c0 = arith.constant 0 : index
    %c0_0 = arith.constant 0 : index
    %c0_1 = arith.constant 0 : index
    %0 = vector.load %arg2[%c0, %c0_0, %c0_1] : memref<1x4x256xf32, #tpu.memory_space<vmem>>, vector<1x4x256xf32>
    %1 = vector.shape_cast %0 : vector<1x4x256xf32> to vector<4x256xf32>
    %c0_2 = arith.constant 0 : index
    %c0_3 = arith.constant 0 : index
    %2 = vector.load %arg3[%c0_2, %c0_3] : memref<4x1xf32, #tpu.memory_space<vmem>>, vector<4x1xf32>
    %3 = vector.broadcast %2 : vector<4x1xf32> to vector<4x256xf32>
    %4 = arith.mulf %1, %3 : vector<4x256xf32>
    %c0_4 = arith.constant 0 : index
    %c0_5 = arith.constant 0 : index
    %5 = vector.load %arg4[%c0_4, %c0_5] : memref<4x1xf32, #tpu.memory_space<vmem>>, vector<4x1xf32>
    %6 = vector.broadcast %5 : vector<4x1xf32> to vector<4x256xf32>
    %7 = arith.addf %4, %6 : vector<4x256xf32>
    %cst = arith.constant 0.000000e+00 : f32
    %8 = vector.broadcast %cst : f32 to vector<4x256xf32>
    %9 = arith.cmpf ogt, %7, %8 : vector<4x256xf32>
    %cst_6 = arith.constant 1.000000e-01 : f32
    %10 = vector.broadcast %cst_6 : f32 to vector<4x256xf32>
    %11 = arith.mulf %10, %7 : vector<4x256xf32>
    %12 = arith.select %9, %7, %11 : vector<4x256xi1>, vector<4x256xf32>
    %c0_7 = arith.constant 0 : index
    %c0_8 = arith.constant 0 : index
    %c0_9 = arith.constant 0 : index
    %13 = vector.load %arg1[%c0_7, %c0_8, %c0_9] : memref<1x4x256xf32, #tpu.memory_space<vmem>>, vector<1x4x256xf32>
    %14 = vector.shape_cast %13 : vector<1x4x256xf32> to vector<4x256xf32>
    %15 = arith.addf %14, %12 : vector<4x256xf32>
    %c0_10 = arith.constant 0 : index
    %c0_11 = arith.constant 0 : index
    %c0_12 = arith.constant 0 : index
    %16 = vector.load %arg5[%c0_10, %c0_11, %c0_12] : memref<1x4x256xf32, #tpu.memory_space<vmem>>, vector<1x4x256xf32>
    %17 = vector.shape_cast %16 : vector<1x4x256xf32> to vector<4x256xf32>
    %18 = vector.shape_cast %15 : vector<4x256xf32> to vector<1x4x256xf32>
    tpu.vector_store %arg5[%c0_10, %c0_11, %c0_12], %18 {strides = array<i32>} : memref<1x4x256xf32, #tpu.memory_space<vmem>>, vector<1x4x256xf32>,
    return
  }
  func.func @transform_0(%arg0: i32) -> (i32, i32, i32) {
    %c0_i32 = arith.constant 0 : i32
    %c0_i32_0 = arith.constant 0 : i32
    %c0_i32_1 = arith.constant 0 : i32
    return %arg0, %c0_i32, %c0_i32_0 : i32, i32, i32
  }
  func.func @transform_1(%arg0: i32) -> (i32, i32, i32) {
    %c0_i32 = arith.constant 0 : i32
    %c0_i32_0 = arith.constant 0 : i32
    %c0_i32_1 = arith.constant 0 : i32
    return %arg0, %c0_i32, %c0_i32_0 : i32, i32, i32
  }
  func.func @transform_2(%arg0: i32) -> (i32, i32) {
    %c0_i32 = arith.constant 0 : i32
    %c0_i32_0 = arith.constant 0 : i32
    %c0_i32_1 = arith.constant 0 : i32
    return %c0_i32, %c0_i32_0 : i32, i32
  }
  func.func @transform_3(%arg0: i32) -> (i32, i32) {
    %c0_i32 = arith.constant 0 : i32
    %c0_i32_0 = arith.constant 0 : i32
    %c0_i32_1 = arith.constant 0 : i32
    return %c0_i32, %c0_i32_0 : i32, i32
  }
  func.func @transform_4(%arg0: i32) -> (i32, i32, i32) {
    %c0_i32 = arith.constant 0 : i32
    %c0_i32_0 = arith.constant 0 : i32
    %c0_i32_1 = arith.constant 0 : i32
    return %arg0, %c0_i32, %c0_i32_0 : i32, i32, i32
  }
}

module attributes {stable_mosaic.version = 11 : i64} {
  func.func @_conv2_stats_kernel(%arg0: i32, %arg1: memref<1x2x256xf32, #tpu.memory_space<vmem>>, %arg2: memref<2x1xf32, #tpu.memory_space<vmem>>, %arg3: memref<2x1xf32, #tpu.memory_space<vmem>>, %arg4: memref<4x72xf32, #tpu.memory_space<vmem>>, %arg5: memref<1x4x256xf32, #tpu.memory_space<vmem>>, %arg6: memref<4x1xf32, #tpu.memory_space<vmem>>, %arg7: memref<4x1xf32, #tpu.memory_space<vmem>>, %arg8: memref<2x512xf32, #tpu.memory_space<vmem>>, %arg9: memref<72x256xf32, #tpu.memory_space<vmem>>) attributes {dimension_semantics = [#tpu.dimension_semantics<arbitrary>], iteration_bounds = array<i64: 2>, scalar_prefetch = 0 : i64, scratch_operands = 2 : i64, tpu.core_type = #tpu.core_type<tc>, window_params = [{transform_indices = @transform_0, window_bounds = array<i64: 1, 2, 256>}, {pipeline_mode = #tpu.pipeline_mode<synchronous>, transform_indices = @transform_1, window_bounds = array<i64: 2, 1>}, {pipeline_mode = #tpu.pipeline_mode<synchronous>, transform_indices = @transform_2, window_bounds = array<i64: 2, 1>}, {pipeline_mode = #tpu.pipeline_mode<synchronous>, transform_indices = @transform_3, window_bounds = array<i64: 4, 72>}, {transform_indices = @transform_4, window_bounds = array<i64: 1, 4, 256>}, {pipeline_mode = #tpu.pipeline_mode<synchronous>, transform_indices = @transform_5, window_bounds = array<i64: 4, 1>}, {pipeline_mode = #tpu.pipeline_mode<synchronous>, transform_indices = @transform_6, window_bounds = array<i64: 4, 1>}]} {
    %c0_i32 = arith.constant 0 : i32
    %0 = arith.cmpi eq, %arg0, %c0_i32 : i32
    %1 = arith.extui %0 : i1 to i32
    %c0_i32_0 = arith.constant 0 : i32
    %2 = arith.cmpi ne, %1, %c0_i32_0 : i32
    scf.if %2 {
      %cst_64 = arith.constant 0.000000e+00 : f32
      %101 = vector.broadcast %cst_64 : f32 to vector<4x1xf32>
      %c0_65 = arith.constant 0 : index
      %c0_66 = arith.constant 0 : index
      %102 = vector.load %arg6[%c0_65, %c0_66] : memref<4x1xf32, #tpu.memory_space<vmem>>, vector<4x1xf32>
      tpu.vector_store %arg6[%c0_65, %c0_66], %101 {strides = array<i32>} : memref<4x1xf32, #tpu.memory_space<vmem>>, vector<4x1xf32>,
      %cst_67 = arith.constant 0.000000e+00 : f32
      %103 = vector.broadcast %cst_67 : f32 to vector<4x1xf32>
      %c0_68 = arith.constant 0 : index
      %c0_69 = arith.constant 0 : index
      %104 = vector.load %arg7[%c0_68, %c0_69] : memref<4x1xf32, #tpu.memory_space<vmem>>, vector<4x1xf32>
      tpu.vector_store %arg7[%c0_68, %c0_69], %103 {strides = array<i32>} : memref<4x1xf32, #tpu.memory_space<vmem>>, vector<4x1xf32>,
    } else {
    }
    %c0 = arith.constant 0 : index
    %c0_1 = arith.constant 0 : index
    %c0_2 = arith.constant 0 : index
    %3 = vector.load %arg1[%c0, %c0_1, %c0_2] : memref<1x2x256xf32, #tpu.memory_space<vmem>>, vector<1x2x256xf32>
    %4 = vector.shape_cast %3 : vector<1x2x256xf32> to vector<2x256xf32>
    %c0_3 = arith.constant 0 : index
    %c0_4 = arith.constant 0 : index
    %5 = vector.load %arg2[%c0_3, %c0_4] : memref<2x1xf32, #tpu.memory_space<vmem>>, vector<2x1xf32>
    %6 = vector.broadcast %5 : vector<2x1xf32> to vector<2x256xf32>
    %7 = arith.mulf %4, %6 : vector<2x256xf32>
    %c0_5 = arith.constant 0 : index
    %c0_6 = arith.constant 0 : index
    %8 = vector.load %arg3[%c0_5, %c0_6] : memref<2x1xf32, #tpu.memory_space<vmem>>, vector<2x1xf32>
    %9 = vector.broadcast %8 : vector<2x1xf32> to vector<2x256xf32>
    %10 = arith.addf %7, %9 : vector<2x256xf32>
    %cst = arith.constant 0.000000e+00 : f32
    %11 = vector.broadcast %cst : f32 to vector<2x256xf32>
    %12 = arith.cmpf ogt, %10, %11 : vector<2x256xf32>
    %cst_7 = arith.constant 1.000000e-01 : f32
    %13 = vector.broadcast %cst_7 : f32 to vector<2x256xf32>
    %14 = arith.mulf %13, %10 : vector<2x256xf32>
    %15 = arith.select %12, %10, %14 : vector<2x256xi1>, vector<2x256xf32>
    %cst_8 = arith.constant 0.000000e+00 : f32
    %16 = vector.broadcast %cst_8 : f32 to vector<2x512xf32>
    %c0_9 = arith.constant 0 : index
    %c0_10 = arith.constant 0 : index
    %17 = vector.load %arg8[%c0_9, %c0_10] : memref<2x512xf32, #tpu.memory_space<vmem>>, vector<2x512xf32>
    tpu.vector_store %arg8[%c0_9, %c0_10], %16 {strides = array<i32>} : memref<2x512xf32, #tpu.memory_space<vmem>>, vector<2x512xf32>,
    %c0_11 = arith.constant 0 : index
    %c128 = arith.constant 128 : index
    %18 = vector.load %arg8[%c0_11, %c128] : memref<2x512xf32, #tpu.memory_space<vmem>>, vector<2x256xf32>
    tpu.vector_store %arg8[%c0_11, %c128], %15 {strides = array<i32>} : memref<2x512xf32, #tpu.memory_space<vmem>>, vector<2x256xf32>,
    %19 = tpu.iota {dimensions = array<i32: 1>} : vector<1x256xi32>
    %c16_i32 = arith.constant 16 : i32
    %c0_i32_12 = arith.constant 0 : i32
    %20 = arith.cmpi eq, %c16_i32, %c0_i32_12 : i32
    %c1_i32 = arith.constant 1 : i32
    %21 = arith.select %20, %c1_i32, %c16_i32 : i32
    %22 = vector.broadcast %21 : i32 to vector<1x256xi32>
    %23 = arith.remsi %19, %22 : vector<1x256xi32>
    %c0_i32_13 = arith.constant 0 : i32
    %24 = vector.broadcast %c0_i32_13 : i32 to vector<1x256xi32>
    %25 = arith.cmpi ne, %23, %24 : vector<1x256xi32>
    %c0_i32_14 = arith.constant 0 : i32
    %26 = vector.broadcast %c0_i32_14 : i32 to vector<1x256xi32>
    %27 = arith.cmpi slt, %23, %26 : vector<1x256xi32>
    %c0_i32_15 = arith.constant 0 : i32
    %28 = arith.cmpi slt, %21, %c0_i32_15 : i32
    %29 = vector.broadcast %28 : i1 to vector<1x256xi1>
    %30 = vector.broadcast %29 : vector<1x256xi1> to vector<1x256xi1>
    %31 = arith.xori %27, %30 : vector<1x256xi1>
    %32 = arith.andi %31, %25 : vector<1x256xi1>
    %33 = vector.broadcast %21 : i32 to vector<1x256xi32>
    %34 = arith.addi %23, %33 : vector<1x256xi32>
    %35 = arith.select %32, %34, %23 : vector<1x256xi1>, vector<1x256xi32>
    %c1_i32_16 = arith.constant 1 : i32
    %36 = vector.broadcast %c1_i32_16 : i32 to vector<1x256xi32>
    %37 = arith.cmpi sge, %35, %36 : vector<1x256xi32>
    %c15_i32 = arith.constant 15 : i32
    %38 = vector.broadcast %c15_i32 : i32 to vector<1x256xi32>
    %39 = arith.cmpi slt, %35, %38 : vector<1x256xi32>
    %cst_17 = arith.constant 0.000000e+00 : f32
    %40 = vector.broadcast %cst_17 : f32 to vector<72x256xf32>
    %c0_18 = arith.constant 0 : index
    %c0_19 = arith.constant 0 : index
    %41 = vector.load %arg9[%c0_18, %c0_19] : memref<72x256xf32, #tpu.memory_space<vmem>>, vector<72x256xf32>
    tpu.vector_store %arg9[%c0_18, %c0_19], %40 {strides = array<i32>} : memref<72x256xf32, #tpu.memory_space<vmem>>, vector<72x256xf32>,
    %c0_20 = arith.constant 0 : index
    %c111 = arith.constant 111 : index
    %42 = vector.load %arg8[%c0_20, %c111] : memref<2x512xf32, #tpu.memory_space<vmem>>, vector<2x256xf32>
    %cst_21 = arith.constant 0.000000e+00 : f32
    %43 = vector.shape_cast %37 : vector<1x256xi1> to vector<1x256xi1>
    %44 = vector.broadcast %43 : vector<1x256xi1> to vector<2x256xi1>
    %45 = vector.broadcast %cst_21 : f32 to vector<2x256xf32>
    %46 = arith.select %44, %42, %45 : vector<2x256xi1>, vector<2x256xf32>
    %c0_22 = arith.constant 0 : index
    %c0_23 = arith.constant 0 : index
    %47 = vector.load %arg9[%c0_22, %c0_23] : memref<72x256xf32, #tpu.memory_space<vmem>>, vector<2x256xf32>
    tpu.vector_store %arg9[%c0_22, %c0_23], %46 {strides = array<i32>} : memref<72x256xf32, #tpu.memory_space<vmem>>, vector<2x256xf32>,
    %c0_24 = arith.constant 0 : index
    %c112 = arith.constant 112 : index
    %48 = vector.load %arg8[%c0_24, %c112] : memref<2x512xf32, #tpu.memory_space<vmem>>, vector<2x256xf32>
    %c8 = arith.constant 8 : index
    %c0_25 = arith.constant 0 : index
    %49 = vector.load %arg9[%c8, %c0_25] : memref<72x256xf32, #tpu.memory_space<vmem>>, vector<2x256xf32>
    tpu.vector_store %arg9[%c8, %c0_25], %48 {strides = array<i32>} : memref<72x256xf32, #tpu.memory_space<vmem>>, vector<2x256xf32>,
    %c0_26 = arith.constant 0 : index
    %c113 = arith.constant 113 : index
    %50 = vector.load %arg8[%c0_26, %c113] : memref<2x512xf32, #tpu.memory_space<vmem>>, vector<2x256xf32>
    %cst_27 = arith.constant 0.000000e+00 : f32
    %51 = vector.shape_cast %39 : vector<1x256xi1> to vector<1x256xi1>
    %52 = vector.broadcast %51 : vector<1x256xi1> to vector<2x256xi1>
    %53 = vector.broadcast %cst_27 : f32 to vector<2x256xf32>
    %54 = arith.select %52, %50, %53 : vector<2x256xi1>, vector<2x256xf32>
    %c16 = arith.constant 16 : index
    %c0_28 = arith.constant 0 : index
    %55 = vector.load %arg9[%c16, %c0_28] : memref<72x256xf32, #tpu.memory_space<vmem>>, vector<2x256xf32>
    tpu.vector_store %arg9[%c16, %c0_28], %54 {strides = array<i32>} : memref<72x256xf32, #tpu.memory_space<vmem>>, vector<2x256xf32>,
    %c0_29 = arith.constant 0 : index
    %c127 = arith.constant 127 : index
    %56 = vector.load %arg8[%c0_29, %c127] : memref<2x512xf32, #tpu.memory_space<vmem>>, vector<2x256xf32>
    %cst_30 = arith.constant 0.000000e+00 : f32
    %57 = vector.shape_cast %37 : vector<1x256xi1> to vector<1x256xi1>
    %58 = vector.broadcast %57 : vector<1x256xi1> to vector<2x256xi1>
    %59 = vector.broadcast %cst_30 : f32 to vector<2x256xf32>
    %60 = arith.select %58, %56, %59 : vector<2x256xi1>, vector<2x256xf32>
    %c24 = arith.constant 24 : index
    %c0_31 = arith.constant 0 : index
    %61 = vector.load %arg9[%c24, %c0_31] : memref<72x256xf32, #tpu.memory_space<vmem>>, vector<2x256xf32>
    tpu.vector_store %arg9[%c24, %c0_31], %60 {strides = array<i32>} : memref<72x256xf32, #tpu.memory_space<vmem>>, vector<2x256xf32>,
    %c0_32 = arith.constant 0 : index
    %c128_33 = arith.constant 128 : index
    %62 = vector.load %arg8[%c0_32, %c128_33] : memref<2x512xf32, #tpu.memory_space<vmem>>, vector<2x256xf32>
    %c32 = arith.constant 32 : index
    %c0_34 = arith.constant 0 : index
    %63 = vector.load %arg9[%c32, %c0_34] : memref<72x256xf32, #tpu.memory_space<vmem>>, vector<2x256xf32>
    tpu.vector_store %arg9[%c32, %c0_34], %62 {strides = array<i32>} : memref<72x256xf32, #tpu.memory_space<vmem>>, vector<2x256xf32>,
    %c0_35 = arith.constant 0 : index
    %c129 = arith.constant 129 : index
    %64 = vector.load %arg8[%c0_35, %c129] : memref<2x512xf32, #tpu.memory_space<vmem>>, vector<2x256xf32>
    %cst_36 = arith.constant 0.000000e+00 : f32
    %65 = vector.shape_cast %39 : vector<1x256xi1> to vector<1x256xi1>
    %66 = vector.broadcast %65 : vector<1x256xi1> to vector<2x256xi1>
    %67 = vector.broadcast %cst_36 : f32 to vector<2x256xf32>
    %68 = arith.select %66, %64, %67 : vector<2x256xi1>, vector<2x256xf32>
    %c40 = arith.constant 40 : index
    %c0_37 = arith.constant 0 : index
    %69 = vector.load %arg9[%c40, %c0_37] : memref<72x256xf32, #tpu.memory_space<vmem>>, vector<2x256xf32>
    tpu.vector_store %arg9[%c40, %c0_37], %68 {strides = array<i32>} : memref<72x256xf32, #tpu.memory_space<vmem>>, vector<2x256xf32>,
    %c0_38 = arith.constant 0 : index
    %c143 = arith.constant 143 : index
    %70 = vector.load %arg8[%c0_38, %c143] : memref<2x512xf32, #tpu.memory_space<vmem>>, vector<2x256xf32>
    %cst_39 = arith.constant 0.000000e+00 : f32
    %71 = vector.shape_cast %37 : vector<1x256xi1> to vector<1x256xi1>
    %72 = vector.broadcast %71 : vector<1x256xi1> to vector<2x256xi1>
    %73 = vector.broadcast %cst_39 : f32 to vector<2x256xf32>
    %74 = arith.select %72, %70, %73 : vector<2x256xi1>, vector<2x256xf32>
    %c48 = arith.constant 48 : index
    %c0_40 = arith.constant 0 : index
    %75 = vector.load %arg9[%c48, %c0_40] : memref<72x256xf32, #tpu.memory_space<vmem>>, vector<2x256xf32>
    tpu.vector_store %arg9[%c48, %c0_40], %74 {strides = array<i32>} : memref<72x256xf32, #tpu.memory_space<vmem>>, vector<2x256xf32>,
    %c0_41 = arith.constant 0 : index
    %c144 = arith.constant 144 : index
    %76 = vector.load %arg8[%c0_41, %c144] : memref<2x512xf32, #tpu.memory_space<vmem>>, vector<2x256xf32>
    %c56 = arith.constant 56 : index
    %c0_42 = arith.constant 0 : index
    %77 = vector.load %arg9[%c56, %c0_42] : memref<72x256xf32, #tpu.memory_space<vmem>>, vector<2x256xf32>
    tpu.vector_store %arg9[%c56, %c0_42], %76 {strides = array<i32>} : memref<72x256xf32, #tpu.memory_space<vmem>>, vector<2x256xf32>,
    %c0_43 = arith.constant 0 : index
    %c145 = arith.constant 145 : index
    %78 = vector.load %arg8[%c0_43, %c145] : memref<2x512xf32, #tpu.memory_space<vmem>>, vector<2x256xf32>
    %cst_44 = arith.constant 0.000000e+00 : f32
    %79 = vector.shape_cast %39 : vector<1x256xi1> to vector<1x256xi1>
    %80 = vector.broadcast %79 : vector<1x256xi1> to vector<2x256xi1>
    %81 = vector.broadcast %cst_44 : f32 to vector<2x256xf32>
    %82 = arith.select %80, %78, %81 : vector<2x256xi1>, vector<2x256xf32>
    %c64 = arith.constant 64 : index
    %c0_45 = arith.constant 0 : index
    %83 = vector.load %arg9[%c64, %c0_45] : memref<72x256xf32, #tpu.memory_space<vmem>>, vector<2x256xf32>
    tpu.vector_store %arg9[%c64, %c0_45], %82 {strides = array<i32>} : memref<72x256xf32, #tpu.memory_space<vmem>>, vector<2x256xf32>,
    %c0_46 = arith.constant 0 : index
    %c0_47 = arith.constant 0 : index
    %84 = vector.load %arg4[%c0_46, %c0_47] : memref<4x72xf32, #tpu.memory_space<vmem>>, vector<4x72xf32>
    %c0_48 = arith.constant 0 : index
    %c0_49 = arith.constant 0 : index
    %85 = vector.load %arg9[%c0_48, %c0_49] : memref<72x256xf32, #tpu.memory_space<vmem>>, vector<72x256xf32>
    %cst_50 = arith.constant dense<0.000000e+00> : vector<4x256xf32>
    %86 = tpu.matmul %84, %85, %cst_50 {dimension_numbers = #tpu.dot_dimension_numbers<[1], [0], [0], [1], [0, 0, 1, 1], [], []>} : vector<4x72xf32>, vector<72x256xf32>, vector<4x256xf32> -> vector<4x256xf32>
    %c0_51 = arith.constant 0 : index
    %c0_52 = arith.constant 0 : index
    %c0_53 = arith.constant 0 : index
    %87 = vector.load %arg5[%c0_51, %c0_52, %c0_53] : memref<1x4x256xf32, #tpu.memory_space<vmem>>, vector<1x4x256xf32>
    %88 = vector.shape_cast %87 : vector<1x4x256xf32> to vector<4x256xf32>
    %89 = vector.shape_cast %86 : vector<4x256xf32> to vector<1x4x256xf32>
    tpu.vector_store %arg5[%c0_51, %c0_52, %c0_53], %89 {strides = array<i32>} : memref<1x4x256xf32, #tpu.memory_space<vmem>>, vector<1x4x256xf32>,
    %c0_54 = arith.constant 0 : index
    %c0_55 = arith.constant 0 : index
    %90 = vector.load %arg6[%c0_54, %c0_55] : memref<4x1xf32, #tpu.memory_space<vmem>>, vector<4x1xf32>
    %cst_56 = arith.constant dense<0.000000e+00> : vector<4xf32>
    %91 = vector.multi_reduction <add>, %86, %cst_56 [1] : vector<4x256xf32> to vector<4xf32>
    %92 = vector.shape_cast %91 : vector<4xf32> to vector<4x1xf32>
    %93 = arith.addf %90, %92 : vector<4x1xf32>
    %c0_57 = arith.constant 0 : index
    %c0_58 = arith.constant 0 : index
    %94 = vector.load %arg6[%c0_57, %c0_58] : memref<4x1xf32, #tpu.memory_space<vmem>>, vector<4x1xf32>
    tpu.vector_store %arg6[%c0_57, %c0_58], %93 {strides = array<i32>} : memref<4x1xf32, #tpu.memory_space<vmem>>, vector<4x1xf32>,
    %c0_59 = arith.constant 0 : index
    %c0_60 = arith.constant 0 : index
    %95 = vector.load %arg7[%c0_59, %c0_60] : memref<4x1xf32, #tpu.memory_space<vmem>>, vector<4x1xf32>
    %96 = arith.mulf %86, %86 : vector<4x256xf32>
    %cst_61 = arith.constant dense<0.000000e+00> : vector<4xf32>
    %97 = vector.multi_reduction <add>, %96, %cst_61 [1] : vector<4x256xf32> to vector<4xf32>
    %98 = vector.shape_cast %97 : vector<4xf32> to vector<4x1xf32>
    %99 = arith.addf %95, %98 : vector<4x1xf32>
    %c0_62 = arith.constant 0 : index
    %c0_63 = arith.constant 0 : index
    %100 = vector.load %arg7[%c0_62, %c0_63] : memref<4x1xf32, #tpu.memory_space<vmem>>, vector<4x1xf32>
    tpu.vector_store %arg7[%c0_62, %c0_63], %99 {strides = array<i32>} : memref<4x1xf32, #tpu.memory_space<vmem>>, vector<4x1xf32>,
    return
  }
  func.func @transform_0(%arg0: i32) -> (i32, i32, i32) {
    %c0_i32 = arith.constant 0 : i32
    %c0_i32_0 = arith.constant 0 : i32
    %c0_i32_1 = arith.constant 0 : i32
    return %arg0, %c0_i32, %c0_i32_0 : i32, i32, i32
  }
  func.func @transform_1(%arg0: i32) -> (i32, i32) {
    %c0_i32 = arith.constant 0 : i32
    %c0_i32_0 = arith.constant 0 : i32
    %c0_i32_1 = arith.constant 0 : i32
    return %c0_i32, %c0_i32_0 : i32, i32
  }
  func.func @transform_2(%arg0: i32) -> (i32, i32) {
    %c0_i32 = arith.constant 0 : i32
    %c0_i32_0 = arith.constant 0 : i32
    %c0_i32_1 = arith.constant 0 : i32
    return %c0_i32, %c0_i32_0 : i32, i32
  }
  func.func @transform_3(%arg0: i32) -> (i32, i32) {
    %c0_i32 = arith.constant 0 : i32
    %c0_i32_0 = arith.constant 0 : i32
    %c0_i32_1 = arith.constant 0 : i32
    return %c0_i32, %c0_i32_0 : i32, i32
  }
  func.func @transform_4(%arg0: i32) -> (i32, i32, i32) {
    %c0_i32 = arith.constant 0 : i32
    %c0_i32_0 = arith.constant 0 : i32
    %c0_i32_1 = arith.constant 0 : i32
    return %arg0, %c0_i32, %c0_i32_0 : i32, i32, i32
  }
  func.func @transform_5(%arg0: i32) -> (i32, i32) {
    %c0_i32 = arith.constant 0 : i32
    %c0_i32_0 = arith.constant 0 : i32
    %c0_i32_1 = arith.constant 0 : i32
    return %c0_i32, %c0_i32_0 : i32, i32
  }
  func.func @transform_6(%arg0: i32) -> (i32, i32) {
    %c0_i32 = arith.constant 0 : i32
    %c0_i32_0 = arith.constant 0 : i32
    %c0_i32_1 = arith.constant 0 : i32
    return %c0_i32, %c0_i32_0 : i32, i32
  }
}

</mosaic_0001>

<llo_original>
// kernel: residual_block.3
$region0: #{residual_block.3}
  #allocation0 [shape = 'u32[]', space=smem, size = 0x4, offset = 0x4, fixed_abs, tag = 'smem constant byte address 0x4 - core index']
  #allocation1 [shape = 'u32[72,128]{1,0:T(1,128)}', space=vmem, size = 0x9000, scoped, tag = 'internal scratch']
  %s0 = inlined_call_operand.vmem [shape: f32[2,4,256], index: 0, kind: input, shape index: {}]
  %s1 = inlined_call_operand.vmem [shape: f32[2,4], index: 1, kind: input, shape index: {}]
  %s2 = inlined_call_operand.vmem [shape: f32[2,2,256], index: 2, kind: output, shape index: {0}]
  %s3 = inlined_call_operand.vmem [shape: f32[2,1], index: 3, kind: output, shape index: {1}]
  %s4 = inlined_call_operand.vmem [shape: f32[2,1], index: 4, kind: output, shape index: {2}]
  %5 = xla_tuple %s2, %s3, %s4
  %s6 = sld [smem:[#allocation0]]
  $region61: #{residual_block.3} parent=0
    _
  %s8 = ssub.s32 1, %s6
  %s9 = scalar_select 0, %s8, %s6
  loop: start=0, step=1, limit=4
  $region2: #{residual_block.3} parent=0 // loop_pre_header
    _
  $region3: #{residual_block.3} parent=0 // loop_header
    %s11 = sphi 0, %s15
    %p12 = scmp.ge.s32.totalorder %s11, 4
    %s21 = sphi 0, %s23
    %s24 = sphi 0, %s21
    %s25 = sphi 0, %s24
    %s41 = sphi 0, %s25
    %s45 = sphi 0, %s45
    %s47 = sphi 0, %s45
    %s48 = sphi 0, %s47
    %s62 = sphi 0, %s48
    %s68 = sphi 0, %s70
    %s71 = sphi 0, %s68
    %s72 = sphi 0, %s71
    %s88 = sphi 0, %s72
    %s92 = sphi 0, %s92
    %s94 = sphi 0, %s92
    %s95 = sphi 0, %s94
    %s109 = sphi 0, %s95
    %s113 = sphi 0, %s113
    %s115 = sphi 0, %s113
    %s116 = sphi 0, %s115
    %s130 = sphi 0, %s116
  $region4: #{residual_block.3} parent=0 // loop_header_branch
    %14 = sbr.rel (%p12) target = $region8
  $region5: #{residual_block.3} parent=0 // loop_body
    %s16 = ssub.s32 %s11, 1
    %s17 = ssub.s32 %s11, 2
    %s18 = sadd.s32 %s11, 1
    %s19 = ssub.s32 %s11, %s18
    %p20 = scmp.eq.s32.totalorder %s19, 0
    %s22 = sadd.s32 %s21, 1
    %s23 = scalar_select %p20, %s21, %s22
    %p26 = pneg %p20
    %p27 = scmp.eq.s32.totalorder %s11, 1
    %p28 = por %p26, %p27
    %p29 = scmp.ne.s32.totalorder %s21, %s24
    %p30 = scmp.eq.s32.totalorder %s11, 0
    %p31 = por %p29, %p30
    %p32 = scmp.ne.s32.totalorder %s21, %s24
    %p33 = scmp.eq.s32.totalorder %s16, 1
    %p34 = por %p32, %p33
    %p35 = scmp.ne.s32.totalorder %s24, %s25
    %p36 = scmp.eq.s32.totalorder %s16, 0
    %p37 = por %p35, %p36
    %p38 = scmp.ne.s32.totalorder %s24, %s25
    %p39 = scmp.eq.s32.totalorder %s17, 1
    %p40 = por %p38, %p39
    %p42 = scmp.ne.s32.totalorder %s25, %s41
    %p43 = scmp.eq.s32.totalorder %s17, 0
    %p44 = por %p42, %p43
    %s46 = sadd.s32 %s45, 1
    %p49 = scmp.eq.s32.totalorder %s11, 1
    %p50 = scmp.ne.s32.totalorder %s45, %s47
    %p51 = scmp.eq.s32.totalorder %s11, 0
    %p52 = por %p50, %p51
    %p53 = scmp.ne.s32.totalorder %s45, %s47
    %p54 = scmp.eq.s32.totalorder %s16, 1
    %p55 = por %p53, %p54
    %p56 = scmp.ne.s32.totalorder %s47, %s48
    %p57 = scmp.eq.s32.totalorder %s16, 0
    %p58 = por %p56, %p57
    %p59 = scmp.ne.s32.totalorder %s47, %s48
    %p60 = scmp.eq.s32.totalorder %s17, 1
    %p61 = por %p59, %p60
    %p63 = scmp.ne.s32.totalorder %s48, %s62
    %p64 = scmp.eq.s32.totalorder %s17, 0
    %p65 = por %p63, %p64
    %s66 = ssub.s32 %s11, %s18
    %p67 = scmp.eq.s32.totalorder %s66, 0
    %s69 = sadd.s32 %s68, 1
    %s70 = scalar_select %p67, %s68, %s69
    %p73 = pneg %p67
    %p74 = scmp.eq.s32.totalorder %s11, 1
    %p75 = por %p73, %p74
    %p76 = scmp.ne.s32.totalorder %s68, %s71
    %p77 = scmp.eq.s32.totalorder %s11, 0
    %p78 = por %p76, %p77
    %p79 = scmp.ne.s32.totalorder %s68, %s71
    %p80 = scmp.eq.s32.totalorder %s16, 1
    %p81 = por %p79, %p80
    %p82 = scmp.ne.s32.totalorder %s71, %s72
    %p83 = scmp.eq.s32.totalorder %s16, 0
    %p84 = por %p82, %p83
    %p85 = scmp.ne.s32.totalorder %s71, %s72
    %p86 = scmp.eq.s32.totalorder %s17, 1
    %p87 = por %p85, %p86
    %p89 = scmp.ne.s32.totalorder %s72, %s88
    %p90 = scmp.eq.s32.totalorder %s17, 0
    %p91 = por %p89, %p90
    %s93 = sadd.s32 %s92, 1
    %p96 = scmp.eq.s32.totalorder %s11, 1
    %p97 = scmp.ne.s32.totalorder %s92, %s94
    %p98 = scmp.eq.s32.totalorder %s11, 0
    %p99 = por %p97, %p98
    %p100 = scmp.ne.s32.totalorder %s92, %s94
    %p101 = scmp.eq.s32.totalorder %s16, 1
    %p102 = por %p100, %p101
    %p103 = scmp.ne.s32.totalorder %s94, %s95
    %p104 = scmp.eq.s32.totalorder %s16, 0
    %p105 = por %p103, %p104
    %p106 = scmp.ne.s32.totalorder %s94, %s95
    %p107 = scmp.eq.s32.totalorder %s17, 1
    %p108 = por %p106, %p107
    %p110 = scmp.ne.s32.totalorder %s95, %s109
    %p111 = scmp.eq.s32.totalorder %s17, 0
    %p112 = por %p110, %p111
    %s114 = sadd.s32 %s113, 1
    %p117 = scmp.eq.s32.totalorder %s11, 1
    %p118 = scmp.ne.s32.totalorder %s113, %s115
    %p119 = scmp.eq.s32.totalorder %s11, 0
    %p120 = por %p118, %p119
    %p121 = scmp.ne.s32.totalorder %s113, %s115
    %p122 = scmp.eq.s32.totalorder %s16, 1
    %p123 = por %p121, %p122
    %p124 = scmp.ne.s32.totalorder %s115, %s116
    %p125 = scmp.eq.s32.totalorder %s16, 0
    %p126 = por %p124, %p125
    %p127 = scmp.ne.s32.totalorder %s115, %s116
    %p128 = scmp.eq.s32.totalorder %s17, 1
    %p129 = por %p127, %p128
    %p131 = scmp.ne.s32.totalorder %s116, %s130
    %p132 = scmp.eq.s32.totalorder %s17, 0
    %p133 = por %p131, %p132
    %p134 = scmp.le.s32.totalorder 1, %s11
    %p135 = scmp.lt.s32.totalorder %s11, 3
    %p136 = pnand %p134, %p135
    %p137 = pneg %p136
    // Predicated region
    $region9: #{residual_block.3} parent=5 // pred_check
      _
    $region10: #{residual_block.3} parent=5 // pred_check_branch
      %139 = sbr.rel (%p136) target = $region12
    $region11: #{residual_block.3} parent=5 // pred_region
      %s140 = ssub.s32 %s11, 1
      // Predicated region
      $region13: #{residual_block.3} parent=11 // pred_check
        %p141 = pneg %p58
      $region14: #{residual_block.3} parent=11 // pred_check_branch
        %143 = sbr.rel (%p141) target = $region16
      $region15: #{residual_block.3} parent=11 // pred_region
        _
      $region16: #{residual_block.3} parent=11 // pred_fallthru
        _
    $region12: #{residual_block.3} parent=5 // pred_fallthru
      _
    %p144 = scmp.lt.s32.totalorder %s11, 2
    // Predicated region
    $region17: #{residual_block.3} parent=5 // pred_check
      %p145 = pneg %p144
    $region18: #{residual_block.3} parent=5 // pred_check_branch
      %147 = sbr.rel (%p145) target = $region20
    $region19: #{residual_block.3} parent=5 // pred_region
      // Predicated region
      $region21: #{residual_block.3} parent=19 // pred_check
        %p148 = pneg %p31
      $region22: #{residual_block.3} parent=19 // pred_check_branch
        %150 = sbr.rel (%p148) target = $region24
      $region23: #{residual_block.3} parent=19 // pred_region
        %p151 = scmp.lt.s32.totalorder %s11, 1
        %s152 = scalar_select %p151, %s11, 1
        %s153 = smul.addr %s152, 2
        %s154 = smul.addr %s153, 4
        %s155 = scalar_lea.vmem %s0, %s154
      $region24: #{residual_block.3} parent=19 // pred_fallthru
        _
    $region20: #{residual_block.3} parent=5 // pred_fallthru
      _
    %p156 = scmp.le.s32.totalorder 1, %s11
    %p157 = scmp.lt.s32.totalorder %s11, 3
    %p158 = pnand %p156, %p157
    %p159 = pneg %p158
    // Predicated region
    $region25: #{residual_block.3} parent=5 // pred_check
      _
    $region26: #{residual_block.3} parent=5 // pred_check_branch
      %161 = sbr.rel (%p158) target = $region28
    $region27: #{residual_block.3} parent=5 // pred_region
      %s162 = ssub.s32 %s11, 1
      %p163 = scmp.lt.s32.totalorder %s16, 1
      %s164 = scalar_select %p163, %s16, 1
      %s165 = smul.addr %s164, 2
      %s166 = smul.addr %s165, 4
      %s167 = scalar_lea.vmem %s0, %s166
      %p168 = pneg %p37
      %p169 = pneg %p34
      %p170 = pneg %p58
      %p171 = pneg %p55
      %p172 = pneg %p84
      %p173 = pneg %p81
      %p174 = scmp.lt.s32.totalorder %s16, 1
      %s175 = scalar_select %p174, %s16, 1
      %s176 = smul.addr %s175, 2
      %s177 = smul.addr %s176, 2
      %s178 = scalar_lea.vmem %s2, %s177
      %p179 = pneg %p105
      %p180 = pneg %p102
      %p181 = pneg %p126
      %p182 = pneg %p123
      %p183 = scmp.lt.s32.totalorder %s16, 1
      %s184 = scalar_select %p183, %s16, 1
      %s185 = smul.addr %s184, 2
      %s186 = smul.addr %s185, 4
      %s187 = scalar_lea.vmem %s0, %s186
      %p188 = scmp.lt.s32.totalorder %s16, 1
      %s189 = scalar_select %p188, %s16, 1
      %s190 = smul.addr %s189, 2
      %s191 = smul.addr %s190, 2
      %s192 = scalar_lea.vmem %s2, %s191
      %p193 = scmp.eq.s32.totalorder %s16, 0
      // Predicated region
      $region29: #{residual_block.3} parent=27 // pred_check
        %p194 = pneg %p193
      $region30: #{residual_block.3} parent=27 // pred_check_branch
        %196 = sbr.rel (%p194) target = $region32
      $region31: #{residual_block.3} parent=27 // pred_region
        %vm197 = vcmask 1024
        %198 = vst.msk [vmem:[%s3] sm:$0x3] %vm197, 0.0
        %199 = vst.msk [vmem:[%s4] sm:$0x3] %vm197, 0.0
      $region32: #{residual_block.3} parent=27 // pred_fallthru
        _
      %v200 = vld [vmem:[%s1] sm:$0x3]
      %v201 = vld [vmem:[%s187] sm:$0xff]
      %203 = vst [vmem:[#allocation1] ss:$2 sm:$0xff] %v201
      %v204 = vld.sshfl [vmem:[#allocation1] sm:$0xff pattern:$0x75316420]
      %v205 = vld.sshfl [vmem:[#allocation1 + $0x8] sm:$0xff pattern:$0x75316420]
      %vm206 = vcmask 31744
      %v208 = vsel %vm206, %v200, 0
      %vm210 = vcmask 1043456
      %v211 = vsel %vm210, %v204, 0
      %v213 = vsel %vm210, %v205, 0
      %215 = vmatpush.msra.mxu0 0.0
      %216 = vmatpush.msra.mxu0 0.0
      %217 = vmatpush.msra.mxu0 0.0
      %218 = vmatpush.msra.mxu0 0.0
      %219 = vmatpush.msra.mxu0 0.0
      %220 = vmatpush.msra.mxu0 0.0
      %221 = vmatpush.msra.mxu0 0.0
      %222 = vmatpush.msra.mxu0 0.0
      %223 = vmatpush.msra.mxu0 0.0
      %224 = vmatpush.msra.mxu0 0.0
      %225 = vmatpush.msra.mxu0 0.0
      %226 = vmatpush.msra.mxu0 0.0
      %227 = vmatpush.msra.mxu0 0.0
      %228 = vmatpush.msra.mxu0 0.0
      %229 = vmatpush.msra.mxu0 0.0
      %230 = vmatpush.msra.mxu0 %v211
      %231 = vmatmul.f32.gmra.mxu0 %v208
      %v232 = vpop.f32.mrf.mxu0
      %v233 = vadd.f32 0.0, %v232
      %234 = vdwg.mxu0
      %235 = vmatpush.msra.mxu0 0.0
      %236 = vmatpush.msra.mxu0 0.0
      %237 = vmatpush.msra.mxu0 0.0
      %238 = vmatpush.msra.mxu0 0.0
      %239 = vmatpush.msra.mxu0 0.0
      %240 = vmatpush.msra.mxu0 0.0
      %241 = vmatpush.msra.mxu0 0.0
      %242 = vmatpush.msra.mxu0 0.0
      %243 = vmatpush.msra.mxu0 0.0
      %244 = vmatpush.msra.mxu0 0.0
      %245 = vmatpush.msra.mxu0 0.0
      %246 = vmatpush.msra.mxu0 0.0
      %247 = vmatpush.msra.mxu0 0.0
      %248 = vmatpush.msra.mxu0 0.0
      %249 = vmatpush.msra.mxu0 0.0
      %250 = vmatpush.msra.mxu0 %v213
      %251 = vmatmul.f32.gmra.mxu0 %v208
      %v252 = vpop.f32.mrf.mxu0
      %v253 = vadd.f32 0.0, %v252
      %254 = vdwg.mxu0
      %v257 = vrot.slane %v253, 6
      %vm258 = vcmask 1041408
      %v259 = vsel %vm258, %v233, %v257
      %261 = vst [vmem:[%s192] sm:$0xf] %v259
      %v262 = vld [vmem:[%s3] sm:$0x3]
      %v263 = vsel %vm258, %v233, 0.0
      %v264 = vsel %vm258, %v253, 0.0
      %v265 = vadd.f32 %v263, %v264
      %266 = vadd.xlane.f32.xlu0 %v265
      %v267 = vpop.xlane.xlu0 %266
      %v268 = vadd.f32 %v262, %v267
      %vm269 = vcmask 1024
      %270 = vst.msk [vmem:[%s3] sm:$0x3] %vm269, %v268
      %v271 = vld [vmem:[%s4] sm:$0x3]
      %v272 = vmul.f32 %v233, %v233
      %v273 = vmul.f32 %v253, %v253
      %v274 = vsel %vm258, %v272, 0.0
      %v275 = vsel %vm258, %v273, 0.0
      %v276 = vadd.f32 %v274, %v275
      %277 = vadd.xlane.f32.xlu0 %v276
      %v278 = vpop.xlane.xlu0 %277
      %v279 = vadd.f32 %v271, %v278
      %280 = vst.msk [vmem:[%s4] sm:$0x3] %vm269, %v279
      %p281 = scmp.lt.s32.totalorder %s16, 1
      %s282 = scalar_select %p281, %s16, 1
      %s283 = smul.addr %s282, 2
      %s284 = smul.addr %s283, 2
      %s285 = scalar_lea.vmem %s2, %s284
      // Predicated region
      $region33: #{residual_block.3} parent=27 // pred_check
        %p286 = pneg %p81
      $region34: #{residual_block.3} parent=27 // pred_check_branch
        %288 = sbr.rel (%p286) target = $region36
      $region35: #{residual_block.3} parent=27 // pred_region
        _
      $region36: #{residual_block.3} parent=27 // pred_fallthru
        _
      // Predicated region
      $region37: #{residual_block.3} parent=27 // pred_check
        %p289 = pneg %p102
      $region38: #{residual_block.3} parent=27 // pred_check_branch
        %291 = sbr.rel (%p289) target = $region40
      $region39: #{residual_block.3} parent=27 // pred_region
        _
      $region40: #{residual_block.3} parent=27 // pred_fallthru
        _
      // Predicated region
      $region41: #{residual_block.3} parent=27 // pred_check
        %p292 = pneg %p123
      $region42: #{residual_block.3} parent=27 // pred_check_branch
        %294 = sbr.rel (%p292) target = $region44
      $region43: #{residual_block.3} parent=27 // pred_region
        _
      $region44: #{residual_block.3} parent=27 // pred_fallthru
        _
      // Predicated region
      $region45: #{residual_block.3} parent=27 // pred_check
        %p295 = pneg %p102
      $region46: #{residual_block.3} parent=27 // pred_check_branch
        %297 = sbr.rel (%p295) target = $region48
      $region47: #{residual_block.3} parent=27 // pred_region
        _
      $region48: #{residual_block.3} parent=27 // pred_fallthru
        _
      // Predicated region
      $region49: #{residual_block.3} parent=27 // pred_check
        %p298 = pneg %p123
      $region50: #{residual_block.3} parent=27 // pred_check_branch
        %300 = sbr.rel (%p298) target = $region52
      $region51: #{residual_block.3} parent=27 // pred_region
        _
      $region52: #{residual_block.3} parent=27 // pred_fallthru
        _
    $region28: #{residual_block.3} parent=5 // pred_fallthru
      _
    %p301 = scmp.le.s32.totalorder 2, %s11
    // Predicated region
    $region53: #{residual_block.3} parent=5 // pred_check
      %p302 = pneg %p301
    $region54: #{residual_block.3} parent=5 // pred_check_branch
      %304 = sbr.rel (%p302) target = $region56
    $region55: #{residual_block.3} parent=5 // pred_region
      %s305 = ssub.s32 %s11, 2
      // Predicated region
      $region57: #{residual_block.3} parent=55 // pred_check
        %p306 = pneg %p87
      $region58: #{residual_block.3} parent=55 // pred_check_branch
        %308 = sbr.rel (%p306) target = $region60
      $region59: #{residual_block.3} parent=55 // pred_region
        %p309 = scmp.lt.s32.totalorder %s17, 1
        %s310 = scalar_select %p309, %s17, 1
        %s311 = smul.addr %s310, 2
        %s312 = smul.addr %s311, 2
        %s313 = scalar_lea.vmem %s2, %s312
      $region60: #{residual_block.3} parent=55 // pred_fallthru
        _
    $region56: #{residual_block.3} parent=5 // pred_fallthru
      _
  $region6: #{residual_block.3} parent=0 // loop_footer
    %s15 = sadd.s32 1, %s11
  $region7: #{residual_block.3} parent=0 // loop_footer_branch
    %10 = sbr.rel target = $region3
  $region8: #{residual_block.3} parent=0 // loop_exit
    _

// kernel: residual_block.5
$region0: #{residual_block.5}
  #allocation0 [shape = 'u32[]', space=smem, size = 0x4, offset = 0x4, fixed_abs, tag = 'smem constant byte address 0x4 - core index']
  #allocation1 [shape = 'u32[72,128]{1,0:T(1,128)}', space=vmem, size = 0x9000, scoped, tag = 'internal scratch']
  %s0 = inlined_call_operand.vmem [shape: f32[2,4,256], index: 0, kind: input, shape index: {}]
  %s1 = inlined_call_operand.vmem [shape: f32[2,4,256], index: 1, kind: input, shape index: {}]
  %s2 = inlined_call_operand.vmem [shape: f32[4,1], index: 2, kind: input, shape index: {}]
  %s3 = inlined_call_operand.vmem [shape: f32[4,1], index: 3, kind: input, shape index: {}]
  %s4 = inlined_call_operand.vmem [shape: f32[2,4,256], index: 4, kind: output, shape index: {}]
  %s5 = sld [smem:[#allocation0]]
  $region49: #{residual_block.5} parent=0
    _
  %s7 = ssub.s32 1, %s5
  %s8 = scalar_select 0, %s7, %s5
  loop: start=0, step=1, limit=4
  $region2: #{residual_block.5} parent=0 // loop_pre_header
    _
  $region3: #{residual_block.5} parent=0 // loop_header
    %s10 = sphi 0, %s14
    %p11 = scmp.ge.s32.totalorder %s10, 4
    %s20 = sphi 0, %s22
    %s23 = sphi 0, %s20
    %s24 = sphi 0, %s23
    %s40 = sphi 0, %s24
    %s46 = sphi 0, %s48
    %s49 = sphi 0, %s46
    %s50 = sphi 0, %s49
    %s66 = sphi 0, %s50
    %s70 = sphi 0, %s70
    %s72 = sphi 0, %s70
    %s73 = sphi 0, %s72
    %s87 = sphi 0, %s73
    %s91 = sphi 0, %s91
    %s93 = sphi 0, %s91
    %s94 = sphi 0, %s93
    %s108 = sphi 0, %s94
    %s114 = sphi 0, %s116
    %s117 = sphi 0, %s114
    %s118 = sphi 0, %s117
    %s134 = sphi 0, %s118
  $region4: #{residual_block.5} parent=0 // loop_header_branch
    %13 = sbr.rel (%p11) target = $region8
  $region5: #{residual_block.5} parent=0 // loop_body
    %s15 = ssub.s32 %s10, 1
    %s16 = ssub.s32 %s10, 2
    %s17 = sadd.s32 %s10, 1
    %s18 = ssub.s32 %s10, %s17
    %p19 = scmp.eq.s32.totalorder %s18, 0
    %s21 = sadd.s32 %s20, 1
    %s22 = scalar_select %p19, %s20, %s21
    %p25 = pneg %p19
    %p26 = scmp.eq.s32.totalorder %s10, 1
    %p27 = por %p25, %p26
    %p28 = scmp.ne.s32.totalorder %s20, %s23
    %p29 = scmp.eq.s32.totalorder %s10, 0
    %p30 = por %p28, %p29
    %p31 = scmp.ne.s32.totalorder %s20, %s23
    %p32 = scmp.eq.s32.totalorder %s15, 1
    %p33 = por %p31, %p32
    %p34 = scmp.ne.s32.totalorder %s23, %s24
    %p35 = scmp.eq.s32.totalorder %s15, 0
    %p36 = por %p34, %p35
    %p37 = scmp.ne.s32.totalorder %s23, %s24
    %p38 = scmp.eq.s32.totalorder %s16, 1
    %p39 = por %p37, %p38
    %p41 = scmp.ne.s32.totalorder %s24, %s40
    %p42 = scmp.eq.s32.totalorder %s16, 0
    %p43 = por %p41, %p42
    %s44 = ssub.s32 %s10, %s17
    %p45 = scmp.eq.s32.totalorder %s44, 0
    %s47 = sadd.s32 %s46, 1
    %s48 = scalar_select %p45, %s46, %s47
    %p51 = pneg %p45
    %p52 = scmp.eq.s32.totalorder %s10, 1
    %p53 = por %p51, %p52
    %p54 = scmp.ne.s32.totalorder %s46, %s49
    %p55 = scmp.eq.s32.totalorder %s10, 0
    %p56 = por %p54, %p55
    %p57 = scmp.ne.s32.totalorder %s46, %s49
    %p58 = scmp.eq.s32.totalorder %s15, 1
    %p59 = por %p57, %p58
    %p60 = scmp.ne.s32.totalorder %s49, %s50
    %p61 = scmp.eq.s32.totalorder %s15, 0
    %p62 = por %p60, %p61
    %p63 = scmp.ne.s32.totalorder %s49, %s50
    %p64 = scmp.eq.s32.totalorder %s16, 1
    %p65 = por %p63, %p64
    %p67 = scmp.ne.s32.totalorder %s50, %s66
    %p68 = scmp.eq.s32.totalorder %s16, 0
    %p69 = por %p67, %p68
    %s71 = sadd.s32 %s70, 1
    %p74 = scmp.eq.s32.totalorder %s10, 1
    %p75 = scmp.ne.s32.totalorder %s70, %s72
    %p76 = scmp.eq.s32.totalorder %s10, 0
    %p77 = por %p75, %p76
    %p78 = scmp.ne.s32.totalorder %s70, %s72
    %p79 = scmp.eq.s32.totalorder %s15, 1
    %p80 = por %p78, %p79
    %p81 = scmp.ne.s32.totalorder %s72, %s73
    %p82 = scmp.eq.s32.totalorder %s15, 0
    %p83 = por %p81, %p82
    %p84 = scmp.ne.s32.totalorder %s72, %s73
    %p85 = scmp.eq.s32.totalorder %s16, 1
    %p86 = por %p84, %p85
    %p88 = scmp.ne.s32.totalorder %s73, %s87
    %p89 = scmp.eq.s32.totalorder %s16, 0
    %p90 = por %p88, %p89
    %s92 = sadd.s32 %s91, 1
    %p95 = scmp.eq.s32.totalorder %s10, 1
    %p96 = scmp.ne.s32.totalorder %s91, %s93
    %p97 = scmp.eq.s32.totalorder %s10, 0
    %p98 = por %p96, %p97
    %p99 = scmp.ne.s32.totalorder %s91, %s93
    %p100 = scmp.eq.s32.totalorder %s15, 1
    %p101 = por %p99, %p100
    %p102 = scmp.ne.s32.totalorder %s93, %s94
    %p103 = scmp.eq.s32.totalorder %s15, 0
    %p104 = por %p102, %p103
    %p105 = scmp.ne.s32.totalorder %s93, %s94
    %p106 = scmp.eq.s32.totalorder %s16, 1
    %p107 = por %p105, %p106
    %p109 = scmp.ne.s32.totalorder %s94, %s108
    %p110 = scmp.eq.s32.totalorder %s16, 0
    %p111 = por %p109, %p110
    %s112 = ssub.s32 %s10, %s17
    %p113 = scmp.eq.s32.totalorder %s112, 0
    %s115 = sadd.s32 %s114, 1
    %s116 = scalar_select %p113, %s114, %s115
    %p119 = pneg %p113
    %p120 = scmp.eq.s32.totalorder %s10, 1
    %p121 = por %p119, %p120
    %p122 = scmp.ne.s32.totalorder %s114, %s117
    %p123 = scmp.eq.s32.totalorder %s10, 0
    %p124 = por %p122, %p123
    %p125 = scmp.ne.s32.totalorder %s114, %s117
    %p126 = scmp.eq.s32.totalorder %s15, 1
    %p127 = por %p125, %p126
    %p128 = scmp.ne.s32.totalorder %s117, %s118
    %p129 = scmp.eq.s32.totalorder %s15, 0
    %p130 = por %p128, %p129
    %p131 = scmp.ne.s32.totalorder %s117, %s118
    %p132 = scmp.eq.s32.totalorder %s16, 1
    %p133 = por %p131, %p132
    %p135 = scmp.ne.s32.totalorder %s118, %s134
    %p136 = scmp.eq.s32.totalorder %s16, 0
    %p137 = por %p135, %p136
    %p138 = scmp.le.s32.totalorder 1, %s10
    %p139 = scmp.lt.s32.totalorder %s10, 3
    %p140 = pnand %p138, %p139
    %p141 = pneg %p140
    // Predicated region
    $region9: #{residual_block.5} parent=5 // pred_check
      _
    $region10: #{residual_block.5} parent=5 // pred_check_branch
      %143 = sbr.rel (%p140) target = $region12
    $region11: #{residual_block.5} parent=5 // pred_region
      %s144 = ssub.s32 %s10, 1
      // Predicated region
      $region13: #{residual_block.5} parent=11 // pred_check
        %p145 = pneg %p83
      $region14: #{residual_block.5} parent=11 // pred_check_branch
        %147 = sbr.rel (%p145) target = $region16
      $region15: #{residual_block.5} parent=11 // pred_region
        _
      $region16: #{residual_block.5} parent=11 // pred_fallthru
        _
      // Predicated region
      $region17: #{residual_block.5} parent=11 // pred_check
        %p148 = pneg %p104
      $region18: #{residual_block.5} parent=11 // pred_check_branch
        %150 = sbr.rel (%p148) target = $region20
      $region19: #{residual_block.5} parent=11 // pred_region
        _
      $region20: #{residual_block.5} parent=11 // pred_fallthru
        _
    $region12: #{residual_block.5} parent=5 // pred_fallthru
      _
    %p151 = scmp.lt.s32.totalorder %s10, 2
    // Predicated region
    $region21: #{residual_block.5} parent=5 // pred_check
      %p152 = pneg %p151
    $region22: #{residual_block.5} parent=5 // pred_check_branch
      %154 = sbr.rel (%p152) target = $region24
    $region23: #{residual_block.5} parent=5 // pred_region
      // Predicated region
      $region25: #{residual_block.5} parent=23 // pred_check
        %p155 = pneg %p30
      $region26: #{residual_block.5} parent=23 // pred_check_branch
        %157 = sbr.rel (%p155) target = $region28
      $region27: #{residual_block.5} parent=23 // pred_region
        %p158 = scmp.lt.s32.totalorder %s10, 1
        %s159 = scalar_select %p158, %s10, 1
        %s160 = smul.addr %s159, 2
        %s161 = smul.addr %s160, 4
        %s162 = scalar_lea.vmem %s0, %s161
      $region28: #{residual_block.5} parent=23 // pred_fallthru
        _
      // Predicated region
      $region29: #{residual_block.5} parent=23 // pred_check
        %p163 = pneg %p56
      $region30: #{residual_block.5} parent=23 // pred_check_branch
        %165 = sbr.rel (%p163) target = $region32
      $region31: #{residual_block.5} parent=23 // pred_region
        %p166 = scmp.lt.s32.totalorder %s10, 1
        %s167 = scalar_select %p166, %s10, 1
        %s168 = smul.addr %s167, 2
        %s169 = smul.addr %s168, 4
        %s170 = scalar_lea.vmem %s1, %s169
      $region32: #{residual_block.5} parent=23 // pred_fallthru
        _
    $region24: #{residual_block.5} parent=5 // pred_fallthru
      _
    %p171 = scmp.le.s32.totalorder 1, %s10
    %p172 = scmp.lt.s32.totalorder %s10, 3
    %p173 = pnand %p171, %p172
    %p174 = pneg %p173
    // Predicated region
    $region33: #{residual_block.5} parent=5 // pred_check
      _
    $region34: #{residual_block.5} parent=5 // pred_check_branch
      %176 = sbr.rel (%p173) target = $region36
    $region35: #{residual_block.5} parent=5 // pred_region
      %s177 = ssub.s32 %s10, 1
      %p178 = scmp.lt.s32.totalorder %s15, 1
      %s179 = scalar_select %p178, %s15, 1
      %s180 = smul.addr %s179, 2
      %s181 = smul.addr %s180, 4
      %s182 = scalar_lea.vmem %s0, %s181
      %p183 = pneg %p36
      %p184 = pneg %p33
      %p185 = scmp.lt.s32.totalorder %s15, 1
      %s186 = scalar_select %p185, %s15, 1
      %s187 = smul.addr %s186, 2
      %s188 = smul.addr %s187, 4
      %s189 = scalar_lea.vmem %s1, %s188
      %p190 = pneg %p62
      %p191 = pneg %p59
      %p192 = pneg %p83
      %p193 = pneg %p80
      %p194 = pneg %p104
      %p195 = pneg %p101
      %p196 = pneg %p130
      %p197 = pneg %p127
      %p198 = scmp.lt.s32.totalorder %s15, 1
      %s199 = scalar_select %p198, %s15, 1
      %s200 = smul.addr %s199, 2
      %s201 = smul.addr %s200, 4
      %s202 = scalar_lea.vmem %s4, %s201
      %p203 = scmp.lt.s32.totalorder %s15, 1
      %s204 = scalar_select %p203, %s15, 1
      %s205 = smul.addr %s204, 2
      %s206 = smul.addr %s205, 4
      %s207 = scalar_lea.vmem %s0, %s206
      %p208 = scmp.lt.s32.totalorder %s15, 1
      %s209 = scalar_select %p208, %s15, 1
      %s210 = smul.addr %s209, 2
      %s211 = smul.addr %s210, 4
      %s212 = scalar_lea.vmem %s1, %s211
      %p213 = scmp.lt.s32.totalorder %s15, 1
      %s214 = scalar_select %p213, %s15, 1
      %s215 = smul.addr %s214, 2
      %s216 = smul.addr %s215, 4
      %s217 = scalar_lea.vmem %s4, %s216
      %v218 = vld [vmem:[%s212] sm:$0xff]
      %v219 = vld [vmem:[%s2] sm:$0xf]
      %221 = vset.pattern.permute.xlu0 0
      %222 = vperm.xlu0 %221, %v219
      %v223 = vpop.permute.xlu0 %222
      %v225 = vunpack.c.l.s4 839922192
      %v226 = vunpack.c.0.s8 %v225
      %v227 = vperm.slane %v223, %v226
      %v229 = vmul.f32 %v218, %v227
      %v230 = vld [vmem:[%s3] sm:$0xf]
      %232 = vset.pattern.permute.xlu0 0
      %233 = vperm.xlu0 %232, %v230
      %v234 = vpop.permute.xlu0 %233
      %v236 = vunpack.c.l.s4 839922192
      %v237 = vunpack.c.0.s8 %v236
      %v238 = vperm.slane %v234, %v237
      %v240 = vadd.f32 %v229, %v238
      %vm241 = vcmp.gt.f32.partialorder %v240, 0.0
      %v242 = vmul.f32 %v240, 0.1
      %v243 = vsel %vm241, %v240, %v242
      %v244 = vld [vmem:[%s207] sm:$0xff]
      %v245 = vadd.f32 %v244, %v243
      %246 = vst [vmem:[%s217] sm:$0xff] %v245
      %p247 = scmp.lt.s32.totalorder %s15, 1
      %s248 = scalar_select %p247, %s15, 1
      %s249 = smul.addr %s248, 2
      %s250 = smul.addr %s249, 4
      %s251 = scalar_lea.vmem %s4, %s250
      // Predicated region
      $region37: #{residual_block.5} parent=35 // pred_check
        %p252 = pneg %p127
      $region38: #{residual_block.5} parent=35 // pred_check_branch
        %254 = sbr.rel (%p252) target = $region40
      $region39: #{residual_block.5} parent=35 // pred_region
        _
      $region40: #{residual_block.5} parent=35 // pred_fallthru
        _
    $region36: #{residual_block.5} parent=5 // pred_fallthru
      _
    %p255 = scmp.le.s32.totalorder 2, %s10
    // Predicated region
    $region41: #{residual_block.5} parent=5 // pred_check
      %p256 = pneg %p255
    $region42: #{residual_block.5} parent=5 // pred_check_branch
      %258 = sbr.rel (%p256) target = $region44
    $region43: #{residual_block.5} parent=5 // pred_region
      %s259 = ssub.s32 %s10, 2
      // Predicated region
      $region45: #{residual_block.5} parent=43 // pred_check
        %p260 = pneg %p133
      $region46: #{residual_block.5} parent=43 // pred_check_branch
        %262 = sbr.rel (%p260) target = $region48
      $region47: #{residual_block.5} parent=43 // pred_region
        %p263 = scmp.lt.s32.totalorder %s16, 1
        %s264 = scalar_select %p263, %s16, 1
        %s265 = smul.addr %s264, 2
        %s266 = smul.addr %s265, 4
        %s267 = scalar_lea.vmem %s4, %s266
      $region48: #{residual_block.5} parent=43 // pred_fallthru
        _
    $region44: #{residual_block.5} parent=5 // pred_fallthru
      _
  $region6: #{residual_block.5} parent=0 // loop_footer
    %s14 = sadd.s32 1, %s10
  $region7: #{residual_block.5} parent=0 // loop_footer_branch
    %9 = sbr.rel target = $region3
  $region8: #{residual_block.5} parent=0 // loop_exit
    _

// kernel: residual_block.4
$region0: #{residual_block.4}
  #allocation0 [shape = 'u32[]', space=smem, size = 0x4, offset = 0x4, fixed_abs, tag = 'smem constant byte address 0x4 - core index']
  #allocation1 [shape = 'u32[72,128]{1,0:T(1,128)}', space=vmem, size = 0x9000, scoped, tag = 'internal scratch']
  #allocation2 [shape = 'f32[2,512]{1,0:T(2,128)}', space=vmem, size = 0x1000, scoped, tag = 'scratch operand']
  #allocation3 [shape = 'f32[72,256]{1,0:T(8,128)}', space=vmem, size = 0x12000, scoped, tag = 'scratch operand']
  %s0 = inlined_call_operand.vmem [shape: f32[2,2,256], index: 0, kind: input, shape index: {}]
  %s1 = inlined_call_operand.vmem [shape: f32[2,1], index: 1, kind: input, shape index: {}]
  %s2 = inlined_call_operand.vmem [shape: f32[2,1], index: 2, kind: input, shape index: {}]
  %s3 = inlined_call_operand.vmem [shape: f32[4,72], index: 3, kind: input, shape index: {}]
  %s4 = inlined_call_operand.vmem [shape: f32[2,4,256], index: 4, kind: output, shape index: {0}]
  %s5 = inlined_call_operand.vmem [shape: f32[4,1], index: 5, kind: output, shape index: {1}]
  %s6 = inlined_call_operand.vmem [shape: f32[4,1], index: 6, kind: output, shape index: {2}]
  %7 = xla_tuple %s4, %s5, %s6
  %s8 = sld [smem:[#allocation0]]
  $region69: #{residual_block.4} parent=0
    _
  %s10 = ssub.s32 1, %s8
  %s11 = scalar_select 0, %s10, %s8
  loop: start=0, step=1, limit=4
  $region2: #{residual_block.4} parent=0 // loop_pre_header
    _
  $region3: #{residual_block.4} parent=0 // loop_header
    %s13 = sphi 0, %s17
    %p14 = scmp.ge.s32.totalorder %s13, 4
    %s23 = sphi 0, %s25
    %s26 = sphi 0, %s23
    %s27 = sphi 0, %s26
    %s43 = sphi 0, %s27
    %s47 = sphi 0, %s47
    %s49 = sphi 0, %s47
    %s50 = sphi 0, %s49
    %s64 = sphi 0, %s50
    %s68 = sphi 0, %s68
    %s70 = sphi 0, %s68
    %s71 = sphi 0, %s70
    %s85 = sphi 0, %s71
    %s89 = sphi 0, %s89
    %s91 = sphi 0, %s89
    %s92 = sphi 0, %s91
    %s106 = sphi 0, %s92
    %s112 = sphi 0, %s114
    %s115 = sphi 0, %s112
    %s116 = sphi 0, %s115
    %s132 = sphi 0, %s116
    %s136 = sphi 0, %s136
    %s138 = sphi 0, %s136
    %s139 = sphi 0, %s138
    %s153 = sphi 0, %s139
    %s157 = sphi 0, %s157
    %s159 = sphi 0, %s157
    %s160 = sphi 0, %s159
    %s174 = sphi 0, %s160
  $region4: #{residual_block.4} parent=0 // loop_header_branch
    %16 = sbr.rel (%p14) target = $region8
  $region5: #{residual_block.4} parent=0 // loop_body
    %s18 = ssub.s32 %s13, 1
    %s19 = ssub.s32 %s13, 2
    %s20 = sadd.s32 %s13, 1
    %s21 = ssub.s32 %s13, %s20
    %p22 = scmp.eq.s32.totalorder %s21, 0
    %s24 = sadd.s32 %s23, 1
    %s25 = scalar_select %p22, %s23, %s24
    %p28 = pneg %p22
    %p29 = scmp.eq.s32.totalorder %s13, 1
    %p30 = por %p28, %p29
    %p31 = scmp.ne.s32.totalorder %s23, %s26
    %p32 = scmp.eq.s32.totalorder %s13, 0
    %p33 = por %p31, %p32
    %p34 = scmp.ne.s32.totalorder %s23, %s26
    %p35 = scmp.eq.s32.totalorder %s18, 1
    %p36 = por %p34, %p35
    %p37 = scmp.ne.s32.totalorder %s26, %s27
    %p38 = scmp.eq.s32.totalorder %s18, 0
    %p39 = por %p37, %p38
    %p40 = scmp.ne.s32.totalorder %s26, %s27
    %p41 = scmp.eq.s32.totalorder %s19, 1
    %p42 = por %p40, %p41
    %p44 = scmp.ne.s32.totalorder %s27, %s43
    %p45 = scmp.eq.s32.totalorder %s19, 0
    %p46 = por %p44, %p45
    %s48 = sadd.s32 %s47, 1
    %p51 = scmp.eq.s32.totalorder %s13, 1
    %p52 = scmp.ne.s32.totalorder %s47, %s49
    %p53 = scmp.eq.s32.totalorder %s13, 0
    %p54 = por %p52, %p53
    %p55 = scmp.ne.s32.totalorder %s47, %s49
    %p56 = scmp.eq.s32.totalorder %s18, 1
    %p57 = por %p55, %p56
    %p58 = scmp.ne.s32.totalorder %s49, %s50
    %p59 = scmp.eq.s32.totalorder %s18, 0
    %p60 = por %p58, %p59
    %p61 = scmp.ne.s32.totalorder %s49, %s50
    %p62 = scmp.eq.s32.totalorder %s19, 1
    %p63 = por %p61, %p62
    %p65 = scmp.ne.s32.totalorder %s50, %s64
    %p66 = scmp.eq.s32.totalorder %s19, 0
    %p67 = por %p65, %p66
    %s69 = sadd.s32 %s68, 1
    %p72 = scmp.eq.s32.totalorder %s13, 1
    %p73 = scmp.ne.s32.totalorder %s68, %s70
    %p74 = scmp.eq.s32.totalorder %s13, 0
    %p75 = por %p73, %p74
    %p76 = scmp.ne.s32.totalorder %s68, %s70
    %p77 = scmp.eq.s32.totalorder %s18, 1
    %p78 = por %p76, %p77
    %p79 = scmp.ne.s32.totalorder %s70, %s71
    %p80 = scmp.eq.s32.totalorder %s18, 0
    %p81 = por %p79, %p80
    %p82 = scmp.ne.s32.totalorder %s70, %s71
    %p83 = scmp.eq.s32.totalorder %s19, 1
    %p84 = por %p82, %p83
    %p86 = scmp.ne.s32.totalorder %s71, %s85
    %p87 = scmp.eq.s32.totalorder %s19, 0
    %p88 = por %p86, %p87
    %s90 = sadd.s32 %s89, 1
    %p93 = scmp.eq.s32.totalorder %s13, 1
    %p94 = scmp.ne.s32.totalorder %s89, %s91
    %p95 = scmp.eq.s32.totalorder %s13, 0
    %p96 = por %p94, %p95
    %p97 = scmp.ne.s32.totalorder %s89, %s91
    %p98 = scmp.eq.s32.totalorder %s18, 1
    %p99 = por %p97, %p98
    %p100 = scmp.ne.s32.totalorder %s91, %s92
    %p101 = scmp.eq.s32.totalorder %s18, 0
    %p102 = por %p100, %p101
    %p103 = scmp.ne.s32.totalorder %s91, %s92
    %p104 = scmp.eq.s32.totalorder %s19, 1
    %p105 = por %p103, %p104
    %p107 = scmp.ne.s32.totalorder %s92, %s106
    %p108 = scmp.eq.s32.totalorder %s19, 0
    %p109 = por %p107, %p108
    %s110 = ssub.s32 %s13, %s20
    %p111 = scmp.eq.s32.totalorder %s110, 0
    %s113 = sadd.s32 %s112, 1
    %s114 = scalar_select %p111, %s112, %s113
    %p117 = pneg %p111
    %p118 = scmp.eq.s32.totalorder %s13, 1
    %p119 = por %p117, %p118
    %p120 = scmp.ne.s32.totalorder %s112, %s115
    %p121 = scmp.eq.s32.totalorder %s13, 0
    %p122 = por %p120, %p121
    %p123 = scmp.ne.s32.totalorder %s112, %s115
    %p124 = scmp.eq.s32.totalorder %s18, 1
    %p125 = por %p123, %p124
    %p126 = scmp.ne.s32.totalorder %s115, %s116
    %p127 = scmp.eq.s32.totalorder %s18, 0
    %p128 = por %p126, %p127
    %p129 = scmp.ne.s32.totalorder %s115, %s116
    %p130 = scmp.eq.s32.totalorder %s19, 1
    %p131 = por %p129, %p130
    %p133 = scmp.ne.s32.totalorder %s116, %s132
    %p134 = scmp.eq.s32.totalorder %s19, 0
    %p135 = por %p133, %p134
    %s137 = sadd.s32 %s136, 1
    %p140 = scmp.eq.s32.totalorder %s13, 1
    %p141 = scmp.ne.s32.totalorder %s136, %s138
    %p142 = scmp.eq.s32.totalorder %s13, 0
    %p143 = por %p141, %p142
    %p144 = scmp.ne.s32.totalorder %s136, %s138
    %p145 = scmp.eq.s32.totalorder %s18, 1
    %p146 = por %p144, %p145
    %p147 = scmp.ne.s32.totalorder %s138, %s139
    %p148 = scmp.eq.s32.totalorder %s18, 0
    %p149 = por %p147, %p148
    %p150 = scmp.ne.s32.totalorder %s138, %s139
    %p151 = scmp.eq.s32.totalorder %s19, 1
    %p152 = por %p150, %p151
    %p154 = scmp.ne.s32.totalorder %s139, %s153
    %p155 = scmp.eq.s32.totalorder %s19, 0
    %p156 = por %p154, %p155
    %s158 = sadd.s32 %s157, 1
    %p161 = scmp.eq.s32.totalorder %s13, 1
    %p162 = scmp.ne.s32.totalorder %s157, %s159
    %p163 = scmp.eq.s32.totalorder %s13, 0
    %p164 = por %p162, %p163
    %p165 = scmp.ne.s32.totalorder %s157, %s159
    %p166 = scmp.eq.s32.totalorder %s18, 1
    %p167 = por %p165, %p166
    %p168 = scmp.ne.s32.totalorder %s159, %s160
    %p169 = scmp.eq.s32.totalorder %s18, 0
    %p170 = por %p168, %p169
    %p171 = scmp.ne.s32.totalorder %s159, %s160
    %p172 = scmp.eq.s32.totalorder %s19, 1
    %p173 = por %p171, %p172
    %p175 = scmp.ne.s32.totalorder %s160, %s174
    %p176 = scmp.eq.s32.totalorder %s19, 0
    %p177 = por %p175, %p176
    %p178 = scmp.le.s32.totalorder 1, %s13
    %p179 = scmp.lt.s32.totalorder %s13, 3
    %p180 = pnand %p178, %p179
    %p181 = pneg %p180
    // Predicated region
    $region9: #{residual_block.4} parent=5 // pred_check
      _
    $region10: #{residual_block.4} parent=5 // pred_check_branch
      %183 = sbr.rel (%p180) target = $region12
    $region11: #{residual_block.4} parent=5 // pred_region
      %s184 = ssub.s32 %s13, 1
      // Predicated region
      $region13: #{residual_block.4} parent=11 // pred_check
        %p185 = pneg %p60
      $region14: #{residual_block.4} parent=11 // pred_check_branch
        %187 = sbr.rel (%p185) target = $region16
      $region15: #{residual_block.4} parent=11 // pred_region
        _
      $region16: #{residual_block.4} parent=11 // pred_fallthru
        _
      // Predicated region
      $region17: #{residual_block.4} parent=11 // pred_check
        %p188 = pneg %p81
      $region18: #{residual_block.4} parent=11 // pred_check_branch
        %190 = sbr.rel (%p188) target = $region20
      $region19: #{residual_block.4} parent=11 // pred_region
        _
      $region20: #{residual_block.4} parent=11 // pred_fallthru
        _
      // Predicated region
      $region21: #{residual_block.4} parent=11 // pred_check
        %p191 = pneg %p102
      $region22: #{residual_block.4} parent=11 // pred_check_branch
        %193 = sbr.rel (%p191) target = $region24
      $region23: #{residual_block.4} parent=11 // pred_region
        _
      $region24: #{residual_block.4} parent=11 // pred_fallthru
        _
    $region12: #{residual_block.4} parent=5 // pred_fallthru
      _
    %p194 = scmp.lt.s32.totalorder %s13, 2
    // Predicated region
    $region25: #{residual_block.4} parent=5 // pred_check
      %p195 = pneg %p194
    $region26: #{residual_block.4} parent=5 // pred_check_branch
      %197 = sbr.rel (%p195) target = $region28
    $region27: #{residual_block.4} parent=5 // pred_region
      // Predicated region
      $region29: #{residual_block.4} parent=27 // pred_check
        %p198 = pneg %p33
      $region30: #{residual_block.4} parent=27 // pred_check_branch
        %200 = sbr.rel (%p198) target = $region32
      $region31: #{residual_block.4} parent=27 // pred_region
        %p201 = scmp.lt.s32.totalorder %s13, 1
        %s202 = scalar_select %p201, %s13, 1
        %s203 = smul.addr %s202, 2
        %s204 = smul.addr %s203, 2
        %s205 = scalar_lea.vmem %s0, %s204
      $region32: #{residual_block.4} parent=27 // pred_fallthru
        _
    $region28: #{residual_block.4} parent=5 // pred_fallthru
      _
    %p206 = scmp.le.s32.totalorder 1, %s13
    %p207 = scmp.lt.s32.totalorder %s13, 3
    %p208 = pnand %p206, %p207
    %p209 = pneg %p208
    // Predicated region
    $region33: #{residual_block.4} parent=5 // pred_check
      _
    $region34: #{residual_block.4} parent=5 // pred_check_branch
      %211 = sbr.rel (%p208) target = $region36
    $region35: #{residual_block.4} parent=5 // pred_region
      %s212 = ssub.s32 %s13, 1
      %p213 = scmp.lt.s32.totalorder %s18, 1
      %s214 = scalar_select %p213, %s18, 1
      %s215 = smul.addr %s214, 2
      %s216 = smul.addr %s215, 2
      %s217 = scalar_lea.vmem %s0, %s216
      %p218 = pneg %p39
      %p219 = pneg %p36
      %p220 = pneg %p60
      %p221 = pneg %p57
      %p222 = pneg %p81
      %p223 = pneg %p78
      %p224 = pneg %p102
      %p225 = pneg %p99
      %p226 = pneg %p128
      %p227 = pneg %p125
      %p228 = scmp.lt.s32.totalorder %s18, 1
      %s229 = scalar_select %p228, %s18, 1
      %s230 = smul.addr %s229, 2
      %s231 = smul.addr %s230, 4
      %s232 = scalar_lea.vmem %s4, %s231
      %p233 = pneg %p149
      %p234 = pneg %p146
      %p235 = pneg %p170
      %p236 = pneg %p167
      %p237 = scmp.lt.s32.totalorder %s18, 1
      %s238 = scalar_select %p237, %s18, 1
      %s239 = smul.addr %s238, 2
      %s240 = smul.addr %s239, 2
      %s241 = scalar_lea.vmem %s0, %s240
      %p242 = scmp.lt.s32.totalorder %s18, 1
      %s243 = scalar_select %p242, %s18, 1
      %s244 = smul.addr %s243, 2
      %s245 = smul.addr %s244, 4
      %s246 = scalar_lea.vmem %s4, %s245
      %p247 = scmp.eq.s32.totalorder %s18, 0
      // Predicated region
      $region37: #{residual_block.4} parent=35 // pred_check
        %p248 = pneg %p247
      $region38: #{residual_block.4} parent=35 // pred_check_branch
        %250 = sbr.rel (%p248) target = $region40
      $region39: #{residual_block.4} parent=35 // pred_region
        %vm251 = vcmask 3072
        %252 = vst.msk [vmem:[%s5] sm:$0xf] %vm251, 0.0
        %253 = vst.msk [vmem:[%s6] sm:$0xf] %vm251, 0.0
      $region40: #{residual_block.4} parent=35 // pred_fallthru
        _
      %v254 = vld [vmem:[%s241] sm:$0xf]
      %v255 = vld [vmem:[%s1] sm:$0x3]
      %257 = vset.pattern.permute.xlu0 0
      %258 = vperm.xlu0 %257, %v255
      %v259 = vpop.permute.xlu0 %258
      %v261 = vunpack.c.l.s4 269488144
      %v262 = vunpack.c.0.s8 %v261
      %v263 = vperm.slane %v259, %v262
      %v265 = vmul.f32 %v254, %v263
      %v266 = vld [vmem:[%s2] sm:$0x3]
      %268 = vset.pattern.permute.xlu0 0
      %269 = vperm.xlu0 %268, %v266
      %v270 = vpop.permute.xlu0 %269
      %v272 = vunpack.c.l.s4 269488144
      %v273 = vunpack.c.0.s8 %v272
      %v274 = vperm.slane %v270, %v273
      %v276 = vadd.f32 %v265, %v274
      %vm277 = vcmp.gt.f32.partialorder %v276, 0.0
      %v278 = vmul.f32 %v276, 0.1
      %v279 = vsel %vm277, %v276, %v278
      %280 = vst [vmem:[#allocation2] sm:$0xff] 0.0
      %281 = vst [vmem:[#allocation2 + $0x2] sm:$0xf] %v279
      %v282 = vlaneseq
      %v283 = vand.u32 %v282, 127
      %v284 = vadd.s32 %v283, 128
      %vm285 = vcmp.lt.s32.totalorder %v283, 0
      %v286 = vsub.s32 0, %v283
      %v287 = vsel %vm285, %v286, %v283
      %v288 = vshrl.u32 %v287, 4
      %v289 = vand.u32 %v287, 15
      %v290 = vsub.s32 0, %v289
      %v291 = vsel %vm285, %v290, %v289
      %vm292 = vcmp.lt.s32.totalorder %v284, 0
      %v293 = vsub.s32 0, %v284
      %v294 = vsel %vm292, %v293, %v284
      %v295 = vshrl.u32 %v294, 4
      %v296 = vand.u32 %v294, 15
      %v297 = vsub.s32 0, %v296
      %v298 = vsel %vm292, %v297, %v296
      %vm299 = vcmp.ne.s32.totalorder %v291, 0
      %vm300 = vcmp.ne.s32.totalorder %v298, 0
      %vm301 = vcmp.lt.s32.totalorder %v291, 0
      %vm302 = vcmp.lt.s32.totalorder %v298, 0
      %vm303 = vmand %vm301, %vm299
      %vm304 = vmand %vm302, %vm300
      %v305 = vadd.s32 %v291, 16
      %v306 = vadd.s32 %v298, 16
      %v307 = vsel %vm303, %v305, %v291
      %v308 = vsel %vm304, %v306, %v298
      %vm309 = vcmp.ge.s32.totalorder %v307, 1
      %vm310 = vcmp.ge.s32.totalorder %v308, 1
      %vm311 = vcmp.lt.s32.totalorder %v307, 15
      %vm312 = vcmp.lt.s32.totalorder %v308, 15
      %313 = vst [vmem:[#allocation3] sm:$0xff] 0.0
      %314 = vst [vmem:[#allocation3 + $0x8] sm:$0xff] 0.0
      %315 = vst [vmem:[#allocation3 + $0x10] sm:$0xff] 0.0
      %316 = vst [vmem:[#allocation3 + $0x18] sm:$0xff] 0.0
      %317 = vst [vmem:[#allocation3 + $0x20] sm:$0xff] 0.0
      %318 = vst [vmem:[#allocation3 + $0x28] sm:$0xff] 0.0
      %319 = vst [vmem:[#allocation3 + $0x30] sm:$0xff] 0.0
      %320 = vst [vmem:[#allocation3 + $0x38] sm:$0xff] 0.0
      %321 = vst [vmem:[#allocation3 + $0x40] sm:$0xff] 0.0
      %322 = vst [vmem:[#allocation3 + $0x48] sm:$0xff] 0.0
      %323 = vst [vmem:[#allocation3 + $0x50] sm:$0xff] 0.0
      %324 = vst [vmem:[#allocation3 + $0x58] sm:$0xff] 0.0
      %325 = vst [vmem:[#allocation3 + $0x60] sm:$0xff] 0.0
      %326 = vst [vmem:[#allocation3 + $0x68] sm:$0xff] 0.0
      %327 = vst [vmem:[#allocation3 + $0x70] sm:$0xff] 0.0
      %328 = vst [vmem:[#allocation3 + $0x78] sm:$0xff] 0.0
      %329 = vst [vmem:[#allocation3 + $0x80] sm:$0xff] 0.0
      %330 = vst [vmem:[#allocation3 + $0x88] sm:$0xff] 0.0
      %v331 = vld [vmem:[#allocation2] sm:$0x3f]
      %v332 = vsel %vm309, 1, 0
      %v333 = vsel %vm310, 1, 0
      %vm334 = vcmp.eq.s32.totalorder %v332, 1
      %vm335 = vcmp.eq.s32.totalorder %v333, 1
      %337 = vst [vmem:[#allocation1] ss:$4 sm:$0xff] %v331
      %v338 = vld.sshfl [vmem:[#allocation1] sm:$0xff pattern:$0x73625140]
      %v339 = vld.sshfl [vmem:[#allocation1 + $0x8] sm:$0xff pattern:$0x73625140]
      %v340 = vld.sshfl [vmem:[#allocation1 + $0x10] sm:$0xff pattern:$0x73625140]
      %341 = vrot.lane.b32.xlu0 %v338, 17
      %v342 = vpop.permute.xlu0 %341
      %343 = vrot.lane.b32.xlu0 %v339, 17
      %v344 = vpop.permute.xlu0 %343
      %345 = vrot.lane.b32.xlu0 %v340, 17
      %v346 = vpop.permute.xlu0 %345
      %vm347 = vcmask 138240
      %v348 = vsel %vm347, %v342, %v344
      %v349 = vsel %vm347, %v344, %v346
      %v352 = vsel %vm334, %v348, 0.0
      %v353 = vsel %vm335, %v349, 0.0
      %354 = vst [vmem:[#allocation3] sm:$0x3] %v352
      %355 = vst [vmem:[#allocation3 + $0x8] sm:$0x3] %v353
      %v356 = vld [vmem:[#allocation2] sm:$0x3f]
      %358 = vst [vmem:[#allocation1] ss:$4 sm:$0xff] %v356
      %v359 = vld.sshfl [vmem:[#allocation1] sm:$0xff pattern:$0x73625140]
      %v360 = vld.sshfl [vmem:[#allocation1 + $0x8] sm:$0xff pattern:$0x73625140]
      %v361 = vld.sshfl [vmem:[#allocation1 + $0x10] sm:$0xff pattern:$0x73625140]
      %362 = vrot.lane.b32.xlu0 %v359, 16
      %v363 = vpop.permute.xlu0 %362
      %364 = vrot.lane.b32.xlu0 %v360, 16
      %v365 = vpop.permute.xlu0 %364
      %366 = vrot.lane.b32.xlu0 %v361, 16
      %v367 = vpop.permute.xlu0 %366
      %vm368 = vcmask 130048
      %v369 = vsel %vm368, %v363, %v365
      %v370 = vsel %vm368, %v365, %v367
      %373 = vst [vmem:[#allocation3 + $0x10] sm:$0x3] %v369
      %374 = vst [vmem:[#allocation3 + $0x18] sm:$0x3] %v370
      %v375 = vld [vmem:[#allocation2] sm:$0x3f]
      %v376 = vsel %vm311, 1, 0
      %v377 = vsel %vm312, 1, 0
      %vm378 = vcmp.eq.s32.totalorder %v376, 1
      %vm379 = vcmp.eq.s32.totalorder %v377, 1
      %381 = vst [vmem:[#allocation1] ss:$4 sm:$0xff] %v375
      %v382 = vld.sshfl [vmem:[#allocation1] sm:$0xff pattern:$0x73625140]
      %v383 = vld.sshfl [vmem:[#allocation1 + $0x8] sm:$0xff pattern:$0x73625140]
      %v384 = vld.sshfl [vmem:[#allocation1 + $0x10] sm:$0xff pattern:$0x73625140]
      %385 = vrot.lane.b32.xlu0 %v382, 15
      %v386 = vpop.permute.xlu0 %385
      %387 = vrot.lane.b32.xlu0 %v383, 15
      %v388 = vpop.permute.xlu0 %387
      %389 = vrot.lane.b32.xlu0 %v384, 15
      %v390 = vpop.permute.xlu0 %389
      %vm391 = vcmask 121856
      %v392 = vsel %vm391, %v386, %v388
      %v393 = vsel %vm391, %v388, %v390
      %v396 = vsel %vm378, %v392, 0.0
      %v397 = vsel %vm379, %v393, 0.0
      %398 = vst [vmem:[#allocation3 + $0x20] sm:$0x3] %v396
      %399 = vst [vmem:[#allocation3 + $0x28] sm:$0x3] %v397
      %v400 = vld [vmem:[#allocation2] sm:$0x3f]
      %402 = vst [vmem:[#allocation1] ss:$4 sm:$0xff] %v400
      %v403 = vld.sshfl [vmem:[#allocation1] sm:$0xff pattern:$0x73625140]
      %v404 = vld.sshfl [vmem:[#allocation1 + $0x8] sm:$0xff pattern:$0x73625140]
      %v405 = vld.sshfl [vmem:[#allocation1 + $0x10] sm:$0xff pattern:$0x73625140]
      %406 = vrot.lane.b32.xlu0 %v403, 1
      %v407 = vpop.permute.xlu0 %406
      %408 = vrot.lane.b32.xlu0 %v404, 1
      %v409 = vpop.permute.xlu0 %408
      %410 = vrot.lane.b32.xlu0 %v405, 1
      %v411 = vpop.permute.xlu0 %410
      %vm412 = vcmask 7168
      %v413 = vsel %vm412, %v407, %v409
      %v414 = vsel %vm412, %v409, %v411
      %v417 = vsel %vm334, %v413, 0.0
      %v418 = vsel %vm335, %v414, 0.0
      %419 = vst [vmem:[#allocation3 + $0x30] sm:$0x3] %v417
      %420 = vst [vmem:[#allocation3 + $0x38] sm:$0x3] %v418
      %v421 = vld [vmem:[#allocation2 + $0x2] sm:$0xf]
      %423 = vst [vmem:[#allocation1] ss:$4 sm:$0xff] %v421
      %v424 = vld.sshfl [vmem:[#allocation1] sm:$0xff pattern:$0x73625140]
      %v425 = vld.sshfl [vmem:[#allocation1 + $0x8] sm:$0xff pattern:$0x73625140]
      %428 = vst [vmem:[#allocation3 + $0x40] sm:$0x3] %v424
      %429 = vst [vmem:[#allocation3 + $0x48] sm:$0x3] %v425
      %v430 = vld [vmem:[#allocation2 + $0x2] sm:$0x3f]
      %432 = vst [vmem:[#allocation1] ss:$4 sm:$0xff] %v430
      %v433 = vld.sshfl [vmem:[#allocation1] sm:$0xff pattern:$0x73625140]
      %v434 = vld.sshfl [vmem:[#allocation1 + $0x8] sm:$0xff pattern:$0x73625140]
      %v435 = vld.sshfl [vmem:[#allocation1 + $0x10] sm:$0xff pattern:$0x73625140]
      %436 = vrot.lane.b32.xlu0 %v433, 127
      %v437 = vpop.permute.xlu0 %436
      %438 = vrot.lane.b32.xlu0 %v434, 127
      %v439 = vpop.permute.xlu0 %438
      %440 = vrot.lane.b32.xlu0 %v435, 127
      %v441 = vpop.permute.xlu0 %440
      %vm442 = vcmask 1039360
      %v443 = vsel %vm442, %v437, %v439
      %v444 = vsel %vm442, %v439, %v441
      %v447 = vsel %vm378, %v443, 0.0
      %v448 = vsel %vm379, %v444, 0.0
      %449 = vst [vmem:[#allocation3 + $0x50] sm:$0x3] %v447
      %450 = vst [vmem:[#allocation3 + $0x58] sm:$0x3] %v448
      %v451 = vld [vmem:[#allocation2 + $0x2] sm:$0x3f]
      %453 = vst [vmem:[#allocation1] ss:$4 sm:$0xff] %v451
      %v454 = vld.sshfl [vmem:[#allocation1] sm:$0xff pattern:$0x73625140]
      %v455 = vld.sshfl [vmem:[#allocation1 + $0x8] sm:$0xff pattern:$0x73625140]
      %v456 = vld.sshfl [vmem:[#allocation1 + $0x10] sm:$0xff pattern:$0x73625140]
      %457 = vrot.lane.b32.xlu0 %v454, 113
      %v458 = vpop.permute.xlu0 %457
      %459 = vrot.lane.b32.xlu0 %v455, 113
      %v460 = vpop.permute.xlu0 %459
      %461 = vrot.lane.b32.xlu0 %v456, 113
      %v462 = vpop.permute.xlu0 %461
      %vm463 = vcmask 924672
      %v464 = vsel %vm463, %v458, %v460
      %v465 = vsel %vm463, %v460, %v462
      %v468 = vsel %vm334, %v464, 0.0
      %v469 = vsel %vm335, %v465, 0.0
      %470 = vst [vmem:[#allocation3 + $0x60] sm:$0x3] %v468
      %471 = vst [vmem:[#allocation3 + $0x68] sm:$0x3] %v469
      %v472 = vld [vmem:[#allocation2 + $0x2] sm:$0x3f]
      %474 = vst [vmem:[#allocation1] ss:$4 sm:$0xff] %v472
      %v475 = vld.sshfl [vmem:[#allocation1] sm:$0xff pattern:$0x73625140]
      %v476 = vld.sshfl [vmem:[#allocation1 + $0x8] sm:$0xff pattern:$0x73625140]
      %v477 = vld.sshfl [vmem:[#allocation1 + $0x10] sm:$0xff pattern:$0x73625140]
      %478 = vrot.lane.b32.xlu0 %v475, 112
      %v479 = vpop.permute.xlu0 %478
      %480 = vrot.lane.b32.xlu0 %v476, 112
      %v481 = vpop.permute.xlu0 %480
      %482 = vrot.lane.b32.xlu0 %v477, 112
      %v483 = vpop.permute.xlu0 %482
      %vm484 = vcmask 916480
      %v485 = vsel %vm484, %v479, %v481
      %v486 = vsel %vm484, %v481, %v483
      %489 = vst [vmem:[#allocation3 + $0x70] sm:$0x3] %v485
      %490 = vst [vmem:[#allocation3 + $0x78] sm:$0x3] %v486
      %v491 = vld [vmem:[#allocation2 + $0x2] sm:$0x3f]
      %493 = vst [vmem:[#allocation1] ss:$4 sm:$0xff] %v491
      %v494 = vld.sshfl [vmem:[#allocation1] sm:$0xff pattern:$0x73625140]
      %v495 = vld.sshfl [vmem:[#allocation1 + $0x8] sm:$0xff pattern:$0x73625140]
      %v496 = vld.sshfl [vmem:[#allocation1 + $0x10] sm:$0xff pattern:$0x73625140]
      %497 = vrot.lane.b32.xlu0 %v494, 111
      %v498 = vpop.permute.xlu0 %497
      %499 = vrot.lane.b32.xlu0 %v495, 111
      %v500 = vpop.permute.xlu0 %499
      %501 = vrot.lane.b32.xlu0 %v496, 111
      %v502 = vpop.permute.xlu0 %501
      %vm503 = vcmask 908288
      %v504 = vsel %vm503, %v498, %v500
      %v505 = vsel %vm503, %v500, %v502
      %v508 = vsel %vm378, %v504, 0.0
      %v509 = vsel %vm379, %v505, 0.0
      %510 = vst [vmem:[#allocation3 + $0x80] sm:$0x3] %v508
      %511 = vst [vmem:[#allocation3 + $0x88] sm:$0x3] %v509
      %v512 = vld [vmem:[%s3] sm:$0xf]
      %v513 = vld [vmem:[#allocation3] sm:$0xff]
      %v514 = vld [vmem:[#allocation3 + $0x8] sm:$0xff]
      %v515 = vld [vmem:[#allocation3 + $0x10] sm:$0xff]
      %v516 = vld [vmem:[#allocation3 + $0x18] sm:$0xff]
      %v517 = vld [vmem:[#allocation3 + $0x20] sm:$0xff]
      %v518 = vld [vmem:[#allocation3 + $0x28] sm:$0xff]
      %v519 = vld [vmem:[#allocation3 + $0x30] sm:$0xff]
      %v520 = vld [vmem:[#allocation3 + $0x38] sm:$0xff]
      %v521 = vld [vmem:[#allocation3 + $0x40] sm:$0xff]
      %v522 = vld [vmem:[#allocation3 + $0x48] sm:$0xff]
      %v523 = vld [vmem:[#allocation3 + $0x50] sm:$0xff]
      %v524 = vld [vmem:[#allocation3 + $0x58] sm:$0xff]
      %v525 = vld [vmem:[#allocation3 + $0x60] sm:$0xff]
      %v526 = vld [vmem:[#allocation3 + $0x68] sm:$0xff]
      %v527 = vld [vmem:[#allocation3 + $0x70] sm:$0xff]
      %v528 = vld [vmem:[#allocation3 + $0x78] sm:$0xff]
      %v529 = vld [vmem:[#allocation3 + $0x80] sm:$0xff]
      %v530 = vld [vmem:[#allocation3 + $0x88] sm:$0xff]
      %vm531 = vcmask 588800
      %v533 = vsel %vm531, %v512, 0
      %535 = vmatpush.msra.mxu0 0.0
      %536 = vmatpush.msra.mxu0 0.0
      %537 = vmatpush.msra.mxu0 0.0
      %538 = vmatpush.msra.mxu0 0.0
      %539 = vmatpush.msra.mxu0 0.0
      %540 = vmatpush.msra.mxu0 0.0
      %541 = vmatpush.msra.mxu0 0.0
      %542 = vmatpush.msra.mxu0 %v529
      %543 = vmatpush.msra.mxu0 %v527
      %544 = vmatpush.msra.mxu0 %v525
      %545 = vmatpush.msra.mxu0 %v523
      %546 = vmatpush.msra.mxu0 %v521
      %547 = vmatpush.msra.mxu0 %v519
      %548 = vmatpush.msra.mxu0 %v517
      %549 = vmatpush.msra.mxu0 %v515
      %550 = vmatpush.msra.mxu0 %v513
      %551 = vmatmul.f32.gmra.mxu0 %v533
      %v552 = vpop.f32.mrf.mxu0
      %v553 = vadd.f32 0.0, %v552
      %554 = vdwg.mxu0
      %555 = vmatpush.msra.mxu0 0.0
      %556 = vmatpush.msra.mxu0 0.0
      %557 = vmatpush.msra.mxu0 0.0
      %558 = vmatpush.msra.mxu0 0.0
      %559 = vmatpush.msra.mxu0 0.0
      %560 = vmatpush.msra.mxu0 0.0
      %561 = vmatpush.msra.mxu0 0.0
      %562 = vmatpush.msra.mxu0 %v530
      %563 = vmatpush.msra.mxu0 %v528
      %564 = vmatpush.msra.mxu0 %v526
      %565 = vmatpush.msra.mxu0 %v524
      %566 = vmatpush.msra.mxu0 %v522
      %567 = vmatpush.msra.mxu0 %v520
      %568 = vmatpush.msra.mxu0 %v518
      %569 = vmatpush.msra.mxu0 %v516
      %570 = vmatpush.msra.mxu0 %v514
      %571 = vmatmul.f32.gmra.mxu0 %v533
      %v572 = vpop.f32.mrf.mxu0
      %v573 = vadd.f32 0.0, %v572
      %574 = vdwg.mxu0
      %v577 = vrot.slane %v573, 4
      %vm578 = vcmask 1043456
      %v579 = vsel %vm578, %v553, %v577
      %581 = vst [vmem:[%s246] sm:$0xff] %v579
      %v582 = vld [vmem:[%s5] sm:$0xf]
      %v583 = vsel %vm578, %v553, 0.0
      %v584 = vsel %vm578, %v573, 0.0
      %v585 = vadd.f32 %v583, %v584
      %586 = vadd.xlane.f32.xlu0 %v585
      %v587 = vpop.xlane.xlu0 %586
      %v588 = vadd.f32 %v582, %v587
      %vm589 = vcmask 3072
      %590 = vst.msk [vmem:[%s5] sm:$0xf] %vm589, %v588
      %v591 = vld [vmem:[%s6] sm:$0xf]
      %v592 = vmul.f32 %v553, %v553
      %v593 = vmul.f32 %v573, %v573
      %v594 = vsel %vm578, %v592, 0.0
      %v595 = vsel %vm578, %v593, 0.0
      %v596 = vadd.f32 %v594, %v595
      %597 = vadd.xlane.f32.xlu0 %v596
      %v598 = vpop.xlane.xlu0 %597
      %v599 = vadd.f32 %v591, %v598
      %600 = vst.msk [vmem:[%s6] sm:$0xf] %vm589, %v599
      %p601 = scmp.lt.s32.totalorder %s18, 1
      %s602 = scalar_select %p601, %s18, 1
      %s603 = smul.addr %s602, 2
      %s604 = smul.addr %s603, 4
      %s605 = scalar_lea.vmem %s4, %s604
      // Predicated region
      $region41: #{residual_block.4} parent=35 // pred_check
        %p606 = pneg %p125
      $region42: #{residual_block.4} parent=35 // pred_check_branch
        %608 = sbr.rel (%p606) target = $region44
      $region43: #{residual_block.4} parent=35 // pred_region
        _
      $region44: #{residual_block.4} parent=35 // pred_fallthru
        _
      // Predicated region
      $region45: #{residual_block.4} parent=35 // pred_check
        %p609 = pneg %p146
      $region46: #{residual_block.4} parent=35 // pred_check_branch
        %611 = sbr.rel (%p609) target = $region48
      $region47: #{residual_block.4} parent=35 // pred_region
        _
      $region48: #{residual_block.4} parent=35 // pred_fallthru
        _
      // Predicated region
      $region49: #{residual_block.4} parent=35 // pred_check
        %p612 = pneg %p167
      $region50: #{residual_block.4} parent=35 // pred_check_branch
        %614 = sbr.rel (%p612) target = $region52
      $region51: #{residual_block.4} parent=35 // pred_region
        _
      $region52: #{residual_block.4} parent=35 // pred_fallthru
        _
      // Predicated region
      $region53: #{residual_block.4} parent=35 // pred_check
        %p615 = pneg %p146
      $region54: #{residual_block.4} parent=35 // pred_check_branch
        %617 = sbr.rel (%p615) target = $region56
      $region55: #{residual_block.4} parent=35 // pred_region
        _
      $region56: #{residual_block.4} parent=35 // pred_fallthru
        _
      // Predicated region
      $region57: #{residual_block.4} parent=35 // pred_check
        %p618 = pneg %p167
      $region58: #{residual_block.4} parent=35 // pred_check_branch
        %620 = sbr.rel (%p618) target = $region60
      $region59: #{residual_block.4} parent=35 // pred_region
        _
      $region60: #{residual_block.4} parent=35 // pred_fallthru
        _
    $region36: #{residual_block.4} parent=5 // pred_fallthru
      _
    %p621 = scmp.le.s32.totalorder 2, %s13
    // Predicated region
    $region61: #{residual_block.4} parent=5 // pred_check
      %p622 = pneg %p621
    $region62: #{residual_block.4} parent=5 // pred_check_branch
      %624 = sbr.rel (%p622) target = $region64
    $region63: #{residual_block.4} parent=5 // pred_region
      %s625 = ssub.s32 %s13, 2
      // Predicated region
      $region65: #{residual_block.4} parent=63 // pred_check
        %p626 = pneg %p131
      $region66: #{residual_block.4} parent=63 // pred_check_branch
        %628 = sbr.rel (%p626) target = $region68
      $region67: #{residual_block.4} parent=63 // pred_region
        %p629 = scmp.lt.s32.totalorder %s19, 1
        %s630 = scalar_select %p629, %s19, 1
        %s631 = smul.addr %s630, 2
        %s632 = smul.addr %s631, 4
        %s633 = scalar_lea.vmem %s4, %s632
      $region68: #{residual_block.4} parent=63 // pred_fallthru
        _
    $region64: #{residual_block.4} parent=5 // pred_fallthru
      _
  $region6: #{residual_block.4} parent=0 // loop_footer
    %s17 = sadd.s32 1, %s13
  $region7: #{residual_block.4} parent=0 // loop_footer_branch
    %12 = sbr.rel target = $region3
  $region8: #{residual_block.4} parent=0 // loop_exit
    _

</llo_original>
